<compile_context>
chip_gen: v7x
topology: tpu7x:2x2x1
jax: 0.10.0
libtpu: 0.0.40
codegen_flags: <defaults>
</compile_context>

<pallas_src>
import jax
import jax.numpy as jnp
import numpy as np
from jax.experimental import pallas as pl
from jax.experimental.pallas import tpu as pltpu

# ---- module hyper-parameters (the reference file's globals), small sizes ----
NUM_FILTER_L1, KER_L1, STRIDE_L1 = 8, 3, 2
NUM_FILTER_L2, KER_L2, STRIDE_L2 = 16, 3, 1
NUM_FILTER_L3, KER_L3, STRIDE_L3 = 16, 3, 1
WIDTH = HEIGHT = 16
IN_CHANNELS = 4
N_ACTIONS = 4
BN_EPS = 1e-5
HEAD_PAD = 128   # lane-dense final store; real logits are the first N_ACTIONS cols

# Throughput-path constants (only used when batch >= GRID_THRESHOLD).
# 256-row f32 tile: (256x1024x4)x2 input buffers + ~1.3 MiB resident bf16
# weights + (256x400) largest intermediate stays far under v7x's 32 MiB
# scoped VMEM default, so one binary is safe on v5e/v6e/v7x.
BATCH_TILE = 256
GRID_THRESHOLD = 512


def conv2d_size_out(size, kernel_size, stride):
    return (size - (kernel_size - 1) - 1) // stride + 1


# ----------------------------- Pallas kernel --------------------------------
def _fused_cnn_kernel(x_ref, m1_ref, b1_ref, m2_ref, b2_ref, m3_ref, b3_ref,
                      w4_ref, b4_ref, w5_ref, b5_ref, o_ref):
    """Entire DQN forward on the MXU.

    x:(M,1024) -> conv1/bn1/relu -> (M,392) -> conv2/bn2/relu -> (M,400)
      -> conv3/bn3/relu -> (M,144) -> fc4/relu -> (M,144) -> head -> (M,128).

    Weights are bf16 (halves the dominant weight-DMA); biases are (1,W) f32
    rows; accumulation is f32 via preferred_element_type.  Intermediates
    never leave the chip.
    """
    def layer(a, w_ref, b_ref, relu=True):
        z = jnp.dot(a.astype(jnp.bfloat16), w_ref[...],
                    preferred_element_type=jnp.float32) + b_ref[...]
        return jnp.maximum(z, 0.0) if relu else z

    a = x_ref[...]                       # native input dtype; cast inside layer()
    a = layer(a, m1_ref, b1_ref)
    a = layer(a, m2_ref, b2_ref)
    a = layer(a, m3_ref, b3_ref)
    a = layer(a, w4_ref, b4_ref)
    o_ref[...] = layer(a, w5_ref, b5_ref, relu=False)


def _full_spec(shape):
    # Single full-array block (no grid); last-two-dims rule is satisfied
    # because the block equals the full array dims.
    return pl.BlockSpec(shape, lambda: (0,) * len(shape))


def _cost_estimate(n, x_itemsize, operands):
    # Advisory hint so XLA can overlap this tiny DMA-bound call with
    # surrounding ops.
    flops = 2 * n * (1024 * 392 + 392 * 400 + 400 * 144 + 144 * 144
                     + 144 * HEAD_PAD)
    weight_bytes = sum(int(np.prod(o.shape)) * o.dtype.itemsize
                       for o in operands[1:])
    bytes_accessed = weight_bytes + n * 1024 * x_itemsize + n * HEAD_PAD * 4
    return pl.CostEstimate(flops=int(flops), transcendentals=0,
                           bytes_accessed=int(bytes_accessed))


def fused_cnn_call(fused, x2d):
    n, k_in = x2d.shape
    weights = (fused["m1"], fused["b1"], fused["m2"], fused["b2"],
               fused["m3"], fused["b3"], fused["w4"], fused["b4"],
               fused["w5"], fused["b5"])
    operands = (x2d,) + weights
    cost = _cost_estimate(n, x2d.dtype.itemsize, operands)

    if n < GRID_THRESHOLD:
        # Latency / small-batch regime: no grid.  A grid is a serial loop on
        # v5e/v6e adding ~0.35us/step for zero parallelism gain, and the
        # whole problem (<2 MiB) trivially fits scoped VMEM.
        return pl.pallas_call(
            _fused_cnn_kernel,
            out_shape=jax.ShapeDtypeStruct((n, HEAD_PAD), jnp.float32),
            in_specs=[_full_spec(op.shape) for op in operands],
            out_specs=_full_spec((n, HEAD_PAD)),
            cost_estimate=cost,
        )(*operands)

    # Throughput regime: tile the batch dim; "parallel" lets v7x's two
    # TensorCores split the grid.  Weight index_maps return the same block at
    # every step so the weight tiles stay resident (no per-step re-DMA).
    n_pad = pl.cdiv(n, BATCH_TILE) * BATCH_TILE
    if n_pad != n:
        x2d = jnp.pad(x2d, ((0, n_pad - n), (0, 0)))
    out = pl.pallas_call(
        _fused_cnn_kernel,
        out_shape=jax.ShapeDtypeStruct((n_pad, HEAD_PAD), jnp.float32),
        grid=(n_pad // BATCH_TILE,),
        in_specs=[pl.BlockSpec((BATCH_TILE, k_in), lambda i: (i, 0))]
                 + [pl.BlockSpec(w.shape, lambda i: (0, 0)) for w in weights],
        out_specs=pl.BlockSpec((BATCH_TILE, HEAD_PAD), lambda i: (i, 0)),
        compiler_params=pltpu.CompilerParams(
            dimension_semantics=("parallel",)),
        cost_estimate=cost,
    )(x2d, *weights)
    return out[:n]


# ------------------- one-time parameter lowering (host side) ----------------
def _fold_bn(w, b, gamma, beta, mean, var):
    """Fold eval-mode BatchNorm into the preceding conv's weight/bias."""
    w = np.asarray(w, np.float32)
    b = np.asarray(b, np.float32)
    gamma = np.asarray(gamma, np.float32)
    beta = np.asarray(beta, np.float32)
    mean = np.asarray(mean, np.float32)
    var = np.asarray(var, np.float32)
    scale = gamma / np.sqrt(var + BN_EPS)
    return w * scale[:, None, None, None], b * scale + (beta - mean * scale)


def _conv_as_dense(w_oihw, b_o, hin, win, stride):
    """Lower a valid-mode strided conv to a dense matmul on the NCHW flatten.

    Returns (M, b_row, hout, wout) such that
        flat_nchw(conv2d(x, w, b)) == flat_nchw(x) @ M + b_row
    M has shape (Cin*Hin*Win, Cout*Hout*Wout); each (row, col) pair is written
    by at most one kernel tap so a direct scatter-assignment is exact.
    """
    w = np.asarray(w_oihw, np.float32)
    b = np.asarray(b_o, np.float32)
    cout, cin, kh, kw = w.shape
    hout = conv2d_size_out(hin, kh, stride)
    wout = conv2d_size_out(win, kw, stride)
    m = np.zeros((cin * hin * win, cout * hout * wout), np.float32)
    co, ci, ki, kj, ho, wo = np.meshgrid(
        np.arange(cout), np.arange(cin), np.arange(kh), np.arange(kw),
        np.arange(hout), np.arange(wout), indexing="ij")
    hi = ho * stride + ki
    wi = wo * stride + kj
    rows = (ci * hin + hi) * win + wi
    cols = (co * hout + ho) * wout + wo
    m[rows.ravel(), cols.ravel()] = w[co.ravel(), ci.ravel(), ki.ravel(), kj.ravel()]
    b_row = np.repeat(b, hout * wout)[None, :].astype(np.float32)
    return m, b_row, hout, wout


def prepare_fused_params(p):
    """Precompute everything the kernel needs (BN fold, conv->dense lowering,
    fc transposes, head lane padding, bf16 weight storage).  Runs once."""
    w1, b1 = _fold_bn(p["conv1_w"], p["conv1_b"], p["bn1_gamma"], p["bn1_beta"],
                      p["bn1_mean"], p["bn1_var"])
    w2, b2 = _fold_bn(p["conv2_w"], p["conv2_b"], p["bn2_gamma"], p["bn2_beta"],
                      p["bn2_mean"], p["bn2_var"])
    w3, b3 = _fold_bn(p["conv3_w"], p["conv3_b"], p["bn3_gamma"], p["bn3_beta"],
                      p["bn3_mean"], p["bn3_var"])

    m1, b1r, h1, ww1 = _conv_as_dense(w1, b1, HEIGHT, WIDTH, STRIDE_L1)
    m2, b2r, h2, ww2 = _conv_as_dense(w2, b2, h1, ww1, STRIDE_L2)
    m3, b3r, h3, ww3 = _conv_as_dense(w3, b3, h2, ww2, STRIDE_L3)

    lin = h3 * ww3 * NUM_FILTER_L3
    fc4_w = np.asarray(p["fc4_w"], np.float32)    # (out, in) PyTorch layout
    fc4_b = np.asarray(p["fc4_b"], np.float32)
    head_w = np.asarray(p["head_w"], np.float32)  # (N_ACTIONS, lin)
    head_b = np.asarray(p["head_b"], np.float32)
    assert fc4_w.shape == (lin, lin) and head_w.shape == (N_ACTIONS, lin)

    w4 = fc4_w.T                       # NCHW-flatten order already matches A3
    b4 = fc4_b[None, :]
    w5 = np.zeros((lin, HEAD_PAD), np.float32)   # lane-dense padded head
    w5[:, :N_ACTIONS] = head_w.T
    b5 = np.zeros((1, HEAD_PAD), np.float32)
    b5[0, :N_ACTIONS] = head_b

    host = dict(m1=m1, b1=b1r, m2=m2, b2=b2r, m3=m3, b3=b3r,
                w4=w4, b4=b4, w5=w5, b5=b5)
    # Matrices (m*, w*) stored in bf16 (dominant HBM bytes); biases stay f32.
    out = {}
    for k, v in host.items():
        if k.startswith("m") or k.startswith("w"):
            out[k] = jnp.asarray(v, jnp.bfloat16)
        else:
            out[k] = jnp.asarray(v, jnp.float32)
    return out


# ---------------------------- parameter init --------------------------------
def _uniform(key, shape, fan_in):
    bound = 1.0 / np.sqrt(fan_in)  # PyTorch default Conv2d/Linear init range
    return jax.random.uniform(key, shape, jnp.float32, -bound, bound)


def init_params(key):
    ks = jax.random.split(key, 10)
    p = {}
    p["conv1_w"] = _uniform(ks[0], (NUM_FILTER_L1, IN_CHANNELS, KER_L1, KER_L1),
                            IN_CHANNELS * KER_L1 * KER_L1)
    p["conv1_b"] = _uniform(ks[1], (NUM_FILTER_L1,), IN_CHANNELS * KER_L1 * KER_L1)
    p["conv2_w"] = _uniform(ks[2], (NUM_FILTER_L2, NUM_FILTER_L1, KER_L2, KER_L2),
                            NUM_FILTER_L1 * KER_L2 * KER_L2)
    p["conv2_b"] = _uniform(ks[3], (NUM_FILTER_L2,), NUM_FILTER_L1 * KER_L2 * KER_L2)
    p["conv3_w"] = _uniform(ks[4], (NUM_FILTER_L3, NUM_FILTER_L2, KER_L3, KER_L3),
                            NUM_FILTER_L2 * KER_L3 * KER_L3)
    p["conv3_b"] = _uniform(ks[5], (NUM_FILTER_L3,), NUM_FILTER_L2 * KER_L3 * KER_L3)

    convw = conv2d_size_out(conv2d_size_out(conv2d_size_out(WIDTH, KER_L1, STRIDE_L1),
                                            KER_L2, STRIDE_L2), KER_L3, STRIDE_L3)
    convh = conv2d_size_out(conv2d_size_out(conv2d_size_out(HEIGHT, KER_L1, STRIDE_L1),
                                            KER_L2, STRIDE_L2), KER_L3, STRIDE_L3)
    lin = convw * convh * NUM_FILTER_L3
    p["fc4_w"] = _uniform(ks[6], (lin, lin), lin)        # (out, in), PyTorch layout
    p["fc4_b"] = _uniform(ks[7], (lin,), lin)
    p["head_w"] = _uniform(ks[8], (N_ACTIONS, lin), lin)
    p["head_b"] = _uniform(ks[9], (N_ACTIONS,), lin)

    for i, c in zip((1, 2, 3), (NUM_FILTER_L1, NUM_FILTER_L2, NUM_FILTER_L3)):
        p[f"bn{i}_gamma"] = jnp.ones((c,), jnp.float32)
        p[f"bn{i}_beta"] = jnp.zeros((c,), jnp.float32)
        p[f"bn{i}_mean"] = jnp.zeros((c,), jnp.float32)
        p[f"bn{i}_var"] = jnp.ones((c,), jnp.float32)
    return p


# ------------------------------- forward ------------------------------------
def cnn_forward(fused, x_nchw):
    n = x_nchw.shape[0]
    # NCHW flatten only (contiguous reshape, free).  The dtype cast now lives
    # inside the kernel; im2col / transposes / BN are baked into m1/m2/m3.
    x2d = x_nchw.reshape(n, -1)
    out_padded = fused_cnn_call(fused, x2d)      # (n, 128) lane-dense logits
    return out_padded[:, :N_ACTIONS]             # drop lane padding


def _reference_forward(fused, x_nchw):
    """Pure-jnp mirror of the kernel math (bf16 weights, f32 accumulation)
    used only for an in-script correctness check."""
    a = x_nchw.reshape(x_nchw.shape[0], -1).astype(jnp.float32)
    for wk, bk in (("m1", "b1"), ("m2", "b2"), ("m3", "b3"), ("w4", "b4")):
        a = jnp.maximum(
            jnp.dot(a.astype(jnp.bfloat16), fused[wk],
                    preferred_element_type=jnp.float32) + fused[bk], 0.0)
    a = jnp.dot(a.astype(jnp.bfloat16), fused["w5"],
                preferred_element_type=jnp.float32) + fused["b5"]
    return a[:, :N_ACTIONS]


if __name__ == "__main__":
    key = jax.random.PRNGKey(0)
    k_param, k_x = jax.random.split(key)
    raw_params = init_params(k_param)
    fused_params = prepare_fused_params(raw_params)   # one-time lowering

    x = jax.random.normal(k_x, (2, IN_CHANNELS, HEIGHT, WIDTH), jnp.float32)

    fwd = jax.jit(cnn_forward)
    out = jax.block_until_ready(fwd(fused_params, x))
    assert out.shape == (2, N_ACTIONS), out.shape
    assert out.dtype == jnp.float32

    ref = jax.block_until_ready(jax.jit(_reference_forward)(fused_params, x))
    np.testing.assert_allclose(np.asarray(out), np.asarray(ref),
                               rtol=2e-2, atol=2e-2)
    print("KERNEL_OK")
</pallas_src>

<mosaic_0001>
module attributes {stable_mosaic.version = 11 : i64} {
  func.func @_fused_cnn_kernel(%arg0: memref<2x1024xf32, #tpu.memory_space<vmem>>, %arg1: memref<1024x392xbf16, #tpu.memory_space<vmem>>, %arg2: memref<1x392xf32, #tpu.memory_space<vmem>>, %arg3: memref<392x400xbf16, #tpu.memory_space<vmem>>, %arg4: memref<1x400xf32, #tpu.memory_space<vmem>>, %arg5: memref<400x144xbf16, #tpu.memory_space<vmem>>, %arg6: memref<1x144xf32, #tpu.memory_space<vmem>>, %arg7: memref<144x144xbf16, #tpu.memory_space<vmem>>, %arg8: memref<1x144xf32, #tpu.memory_space<vmem>>, %arg9: memref<144x128xbf16, #tpu.memory_space<vmem>>, %arg10: memref<1x128xf32, #tpu.memory_space<vmem>>, %arg11: memref<2x128xf32, #tpu.memory_space<vmem>>) attributes {dimension_semantics = [], scalar_prefetch = 0 : i64, scratch_operands = 0 : i64, tpu.core_type = #tpu.core_type<tc>} {
    %c0 = arith.constant 0 : index
    %c0_0 = arith.constant 0 : index
    %0 = vector.load %arg0[%c0, %c0_0] : memref<2x1024xf32, #tpu.memory_space<vmem>>, vector<2x1024xf32>
    %1 = arith.truncf %0 : vector<2x1024xf32> to vector<2x1024xbf16>
    %c0_1 = arith.constant 0 : index
    %c0_2 = arith.constant 0 : index
    %2 = vector.load %arg1[%c0_1, %c0_2] : memref<1024x392xbf16, #tpu.memory_space<vmem>>, vector<1024x392xbf16>
    %cst = arith.constant dense<0.000000e+00> : vector<2x392xf32>
    %3 = tpu.matmul %1, %2, %cst {dimension_numbers = #tpu.dot_dimension_numbers<[1], [0], [0], [1], [0, 0, 1, 1], [], []>} : vector<2x1024xbf16>, vector<1024x392xbf16>, vector<2x392xf32> -> vector<2x392xf32>
    %c0_3 = arith.constant 0 : index
    %c0_4 = arith.constant 0 : index
    %4 = vector.load %arg2[%c0_3, %c0_4] : memref<1x392xf32, #tpu.memory_space<vmem>>, vector<1x392xf32>
    %5 = vector.broadcast %4 : vector<1x392xf32> to vector<2x392xf32>
    %6 = arith.addf %3, %5 : vector<2x392xf32>
    %cst_5 = arith.constant 0.000000e+00 : f32
    %7 = vector.broadcast %cst_5 : f32 to vector<2x392xf32>
    %8 = arith.maximumf %6, %7 : vector<2x392xf32>
    %9 = arith.truncf %8 : vector<2x392xf32> to vector<2x392xbf16>
    %c0_6 = arith.constant 0 : index
    %c0_7 = arith.constant 0 : index
    %10 = vector.load %arg3[%c0_6, %c0_7] : memref<392x400xbf16, #tpu.memory_space<vmem>>, vector<392x400xbf16>
    %cst_8 = arith.constant dense<0.000000e+00> : vector<2x400xf32>
    %11 = tpu.matmul %9, %10, %cst_8 {dimension_numbers = #tpu.dot_dimension_numbers<[1], [0], [0], [1], [0, 0, 1, 1], [], []>} : vector<2x392xbf16>, vector<392x400xbf16>, vector<2x400xf32> -> vector<2x400xf32>
    %c0_9 = arith.constant 0 : index
    %c0_10 = arith.constant 0 : index
    %12 = vector.load %arg4[%c0_9, %c0_10] : memref<1x400xf32, #tpu.memory_space<vmem>>, vector<1x400xf32>
    %13 = vector.broadcast %12 : vector<1x400xf32> to vector<2x400xf32>
    %14 = arith.addf %11, %13 : vector<2x400xf32>
    %cst_11 = arith.constant 0.000000e+00 : f32
    %15 = vector.broadcast %cst_11 : f32 to vector<2x400xf32>
    %16 = arith.maximumf %14, %15 : vector<2x400xf32>
    %17 = arith.truncf %16 : vector<2x400xf32> to vector<2x400xbf16>
    %c0_12 = arith.constant 0 : index
    %c0_13 = arith.constant 0 : index
    %18 = vector.load %arg5[%c0_12, %c0_13] : memref<400x144xbf16, #tpu.memory_space<vmem>>, vector<400x144xbf16>
    %cst_14 = arith.constant dense<0.000000e+00> : vector<2x144xf32>
    %19 = tpu.matmul %17, %18, %cst_14 {dimension_numbers = #tpu.dot_dimension_numbers<[1], [0], [0], [1], [0, 0, 1, 1], [], []>} : vector<2x400xbf16>, vector<400x144xbf16>, vector<2x144xf32> -> vector<2x144xf32>
    %c0_15 = arith.constant 0 : index
    %c0_16 = arith.constant 0 : index
    %20 = vector.load %arg6[%c0_15, %c0_16] : memref<1x144xf32, #tpu.memory_space<vmem>>, vector<1x144xf32>
    %21 = vector.broadcast %20 : vector<1x144xf32> to vector<2x144xf32>
    %22 = arith.addf %19, %21 : vector<2x144xf32>
    %cst_17 = arith.constant 0.000000e+00 : f32
    %23 = vector.broadcast %cst_17 : f32 to vector<2x144xf32>
    %24 = arith.maximumf %22, %23 : vector<2x144xf32>
    %25 = arith.truncf %24 : vector<2x144xf32> to vector<2x144xbf16>
    %c0_18 = arith.constant 0 : index
    %c0_19 = arith.constant 0 : index
    %26 = vector.load %arg7[%c0_18, %c0_19] : memref<144x144xbf16, #tpu.memory_space<vmem>>, vector<144x144xbf16>
    %cst_20 = arith.constant dense<0.000000e+00> : vector<2x144xf32>
    %27 = tpu.matmul %25, %26, %cst_20 {dimension_numbers = #tpu.dot_dimension_numbers<[1], [0], [0], [1], [0, 0, 1, 1], [], []>} : vector<2x144xbf16>, vector<144x144xbf16>, vector<2x144xf32> -> vector<2x144xf32>
    %c0_21 = arith.constant 0 : index
    %c0_22 = arith.constant 0 : index
    %28 = vector.load %arg8[%c0_21, %c0_22] : memref<1x144xf32, #tpu.memory_space<vmem>>, vector<1x144xf32>
    %29 = vector.broadcast %28 : vector<1x144xf32> to vector<2x144xf32>
    %30 = arith.addf %27, %29 : vector<2x144xf32>
    %cst_23 = arith.constant 0.000000e+00 : f32
    %31 = vector.broadcast %cst_23 : f32 to vector<2x144xf32>
    %32 = arith.maximumf %30, %31 : vector<2x144xf32>
    %33 = arith.truncf %32 : vector<2x144xf32> to vector<2x144xbf16>
    %c0_24 = arith.constant 0 : index
    %c0_25 = arith.constant 0 : index
    %34 = vector.load %arg9[%c0_24, %c0_25] : memref<144x128xbf16, #tpu.memory_space<vmem>>, vector<144x128xbf16>
    %cst_26 = arith.constant dense<0.000000e+00> : vector<2x128xf32>
    %35 = tpu.matmul %33, %34, %cst_26 {dimension_numbers = #tpu.dot_dimension_numbers<[1], [0], [0], [1], [0, 0, 1, 1], [], []>} : vector<2x144xbf16>, vector<144x128xbf16>, vector<2x128xf32> -> vector<2x128xf32>
    %c0_27 = arith.constant 0 : index
    %c0_28 = arith.constant 0 : index
    %36 = vector.load %arg10[%c0_27, %c0_28] : memref<1x128xf32, #tpu.memory_space<vmem>>, vector<1x128xf32>
    %37 = vector.broadcast %36 : vector<1x128xf32> to vector<2x128xf32>
    %38 = arith.addf %35, %37 : vector<2x128xf32>
    %c0_29 = arith.constant 0 : index
    %c0_30 = arith.constant 0 : index
    %39 = vector.load %arg11[%c0_29, %c0_30] : memref<2x128xf32, #tpu.memory_space<vmem>>, vector<2x128xf32>
    tpu.vector_store %arg11[%c0_29, %c0_30], %38 {strides = array<i32>} : memref<2x128xf32, #tpu.memory_space<vmem>>, vector<2x128xf32>,
    return
  }
}

</mosaic_0001>

<llo_original>
// kernel: cnn_forward.1
$region0: #{cnn_forward.1}
  #allocation0 [shape = 'u32[]', space=smem, size = 0x4, offset = 0x4, fixed_abs, tag = 'smem constant byte address 0x4 - core index']
  #allocation1 [shape = 'u32[144,128]{1,0:T(1,128)}', space=vmem, size = 0x12000, scoped, tag = 'internal scratch']
  %s0 = inlined_call_operand.vmem [shape: f32[2,1024], index: 0, kind: input, shape index: {}]
  %s1 = inlined_call_operand.vmem [shape: bf16[1024,392], index: 1, kind: input, shape index: {}]
  %s2 = inlined_call_operand.vmem [shape: f32[1,392], index: 2, kind: input, shape index: {}]
  %s3 = inlined_call_operand.vmem [shape: bf16[392,400], index: 3, kind: input, shape index: {}]
  %s4 = inlined_call_operand.vmem [shape: f32[1,400], index: 4, kind: input, shape index: {}]
  %s5 = inlined_call_operand.vmem [shape: bf16[400,144], index: 5, kind: input, shape index: {}]
  %s6 = inlined_call_operand.vmem [shape: f32[1,144], index: 6, kind: input, shape index: {}]
  %s7 = inlined_call_operand.vmem [shape: bf16[144,144], index: 7, kind: input, shape index: {}]
  %s8 = inlined_call_operand.vmem [shape: f32[1,144], index: 8, kind: input, shape index: {}]
  %s9 = inlined_call_operand.vmem [shape: bf16[144,128], index: 9, kind: input, shape index: {}]
  %s10 = inlined_call_operand.vmem [shape: f32[1,128], index: 10, kind: input, shape index: {}]
  %s11 = inlined_call_operand.hbm [shape: f32[2,128], index: 11, kind: output, shape index: {}]
  %s12 = sld [smem:[#allocation0]]
  $region54: #{cnn_forward.1} parent=0
    _
  %s14 = ssub.s32 1, %s12
  %s15 = scalar_select 0, %s14, %s12
  $region1: #{cnn_forward.1} parent=0
    #allocation2 [shape = 'u8[1024]{0}', space=vmem, size = 0x400, scoped, tag = 'output window, operand 0, single buffered']
    #allocation3 [shape = 's32[1]{0}', space=sflag, size = 0x4, scoped, tag = 'scoped memory for cnn_forward.1']
    %16 = vsyncpa [#allocation3], 0
    // Predicated region
    $region2: #{cnn_forward.1} parent=1 // pred_check
      _
    $region3: #{cnn_forward.1} parent=1 // pred_check_branch
      %18 = sbr.rel (0) target = $region5
    $region4: #{cnn_forward.1} parent=1 // pred_region
      _
    $region5: #{cnn_forward.1} parent=1 // pred_fallthru
      _
    // Predicated region
    $region6: #{cnn_forward.1} parent=1 // pred_check
      _
    $region7: #{cnn_forward.1} parent=1 // pred_check_branch
      %20 = sbr.rel (0) target = $region9
    $region8: #{cnn_forward.1} parent=1 // pred_region
      _
    $region9: #{cnn_forward.1} parent=1 // pred_fallthru
      _
    // Predicated region
    $region10: #{cnn_forward.1} parent=1 // pred_check
      _
    $region11: #{cnn_forward.1} parent=1 // pred_check_branch
      %22 = sbr.rel (0) target = $region13
    $region12: #{cnn_forward.1} parent=1 // pred_region
      _
    $region13: #{cnn_forward.1} parent=1 // pred_fallthru
      _
    // Predicated region
    $region14: #{cnn_forward.1} parent=1 // pred_check
      _
    $region15: #{cnn_forward.1} parent=1 // pred_check_branch
      %24 = sbr.rel (0) target = $region17
    $region16: #{cnn_forward.1} parent=1 // pred_region
      _
    $region17: #{cnn_forward.1} parent=1 // pred_fallthru
      _
    // Predicated region
    $region18: #{cnn_forward.1} parent=1 // pred_check
      _
    $region19: #{cnn_forward.1} parent=1 // pred_check_branch
      %26 = sbr.rel (0) target = $region21
    $region20: #{cnn_forward.1} parent=1 // pred_region
      _
    $region21: #{cnn_forward.1} parent=1 // pred_fallthru
      _
    // Predicated region
    $region22: #{cnn_forward.1} parent=1 // pred_check
      _
    $region23: #{cnn_forward.1} parent=1 // pred_check_branch
      %28 = sbr.rel (0) target = $region25
    $region24: #{cnn_forward.1} parent=1 // pred_region
      _
    $region25: #{cnn_forward.1} parent=1 // pred_fallthru
      _
    // Predicated region
    $region26: #{cnn_forward.1} parent=1 // pred_check
      _
    $region27: #{cnn_forward.1} parent=1 // pred_check_branch
      %30 = sbr.rel (0) target = $region29
    $region28: #{cnn_forward.1} parent=1 // pred_region
      _
    $region29: #{cnn_forward.1} parent=1 // pred_fallthru
      _
    // Predicated region
    $region30: #{cnn_forward.1} parent=1 // pred_check
      _
    $region31: #{cnn_forward.1} parent=1 // pred_check_branch
      %32 = sbr.rel (0) target = $region33
    $region32: #{cnn_forward.1} parent=1 // pred_region
      _
    $region33: #{cnn_forward.1} parent=1 // pred_fallthru
      _
    // Predicated region
    $region34: #{cnn_forward.1} parent=1 // pred_check
      _
    $region35: #{cnn_forward.1} parent=1 // pred_check_branch
      %34 = sbr.rel (0) target = $region37
    $region36: #{cnn_forward.1} parent=1 // pred_region
      _
    $region37: #{cnn_forward.1} parent=1 // pred_fallthru
      _
    // Predicated region
    $region38: #{cnn_forward.1} parent=1 // pred_check
      _
    $region39: #{cnn_forward.1} parent=1 // pred_check_branch
      %36 = sbr.rel (0) target = $region41
    $region40: #{cnn_forward.1} parent=1 // pred_region
      _
    $region41: #{cnn_forward.1} parent=1 // pred_fallthru
      _
    // Predicated region
    $region42: #{cnn_forward.1} parent=1 // pred_check
      _
    $region43: #{cnn_forward.1} parent=1 // pred_check_branch
      %38 = sbr.rel (0) target = $region45
    $region44: #{cnn_forward.1} parent=1 // pred_region
      _
    $region45: #{cnn_forward.1} parent=1 // pred_fallthru
      _
    %v40 = vld [vmem:[%s0] sm:$0xff]
    %v41 = vld [vmem:[%s0 + $0x8] sm:$0xff]
    %v44 = vcombine.high %v40, %v40
    %v46 = vunpack.c.l.s4 1983009808
    %v47 = vunpack.c.0.s8 %v46
    %v48 = vlaneseq
    %v49 = vshrl.u32 %v48, 7
    %v50 = vsub.s32 %v47, %v49
    %v51 = vrot.slane %v40, %v50
    %v53 = vunpack.c.l.s4 1983009808
    %v54 = vunpack.c.0.s8 %v53
    %v55 = vlaneseq
    %v56 = vshrl.u32 %v55, 7
    %v57 = vsub.s32 %v54, %v56
    %v58 = vrot.slane %v44, %v57
    %v59 = vcombine.high %v51, %v51
    %v60 = vcombine.high %v58, %v58
    %v61 = vcombine.high %v41, %v41
    %v63 = vunpack.c.l.s4 1983009808
    %v64 = vunpack.c.0.s8 %v63
    %v65 = vlaneseq
    %v66 = vshrl.u32 %v65, 7
    %v67 = vsub.s32 %v64, %v66
    %v68 = vrot.slane %v41, %v67
    %v70 = vunpack.c.l.s4 1983009808
    %v71 = vunpack.c.0.s8 %v70
    %v72 = vlaneseq
    %v73 = vshrl.u32 %v72, 7
    %v74 = vsub.s32 %v71, %v73
    %v75 = vrot.slane %v61, %v74
    %v76 = vcombine.high %v68, %v68
    %v77 = vcombine.high %v75, %v75
    %v86 = vpack.c.bf16 %v51, %v51
    %v87 = vpack.c.bf16 %v59, %v59
    %v88 = vpack.c.bf16 %v58, %v58
    %v89 = vpack.c.bf16 %v60, %v60
    %v90 = vpack.c.bf16 %v68, %v68
    %v91 = vpack.c.bf16 %v76, %v76
    %v92 = vpack.c.bf16 %v75, %v75
    %v93 = vpack.c.bf16 %v77, %v77
    %v94 = vld [vmem:[%s1] sm:$0xff]
    %v95 = vld [vmem:[%s1 + $0x8] sm:$0xff]
    %v96 = vld [vmem:[%s1 + $0x10] sm:$0xff]
    %v97 = vld [vmem:[%s1 + $0x18] sm:$0xff]
    %v98 = vld [vmem:[%s1 + $0x20] sm:$0xff]
    %v99 = vld [vmem:[%s1 + $0x28] sm:$0xff]
    %v100 = vld [vmem:[%s1 + $0x30] sm:$0xff]
    %v101 = vld [vmem:[%s1 + $0x38] sm:$0xff]
    %v102 = vld [vmem:[%s1 + $0x40] sm:$0xff]
    %v103 = vld [vmem:[%s1 + $0x48] sm:$0xff]
    %v104 = vld [vmem:[%s1 + $0x50] sm:$0xff]
    %v105 = vld [vmem:[%s1 + $0x58] sm:$0xff]
    %v106 = vld [vmem:[%s1 + $0x60] sm:$0xff]
    %v107 = vld [vmem:[%s1 + $0x68] sm:$0xff]
    %v108 = vld [vmem:[%s1 + $0x70] sm:$0xff]
    %v109 = vld [vmem:[%s1 + $0x78] sm:$0xff]
    %v110 = vld [vmem:[%s1 + $0x80] sm:$0xff]
    %v111 = vld [vmem:[%s1 + $0x88] sm:$0xff]
    %v112 = vld [vmem:[%s1 + $0x90] sm:$0xff]
    %v113 = vld [vmem:[%s1 + $0x98] sm:$0xff]
    %v114 = vld [vmem:[%s1 + $0xa0] sm:$0xff]
    %v115 = vld [vmem:[%s1 + $0xa8] sm:$0xff]
    %v116 = vld [vmem:[%s1 + $0xb0] sm:$0xff]
    %v117 = vld [vmem:[%s1 + $0xb8] sm:$0xff]
    %v118 = vld [vmem:[%s1 + $0xc0] sm:$0xff]
    %v119 = vld [vmem:[%s1 + $0xc8] sm:$0xff]
    %v120 = vld [vmem:[%s1 + $0xd0] sm:$0xff]
    %v121 = vld [vmem:[%s1 + $0xd8] sm:$0xff]
    %v122 = vld [vmem:[%s1 + $0xe0] sm:$0xff]
    %v123 = vld [vmem:[%s1 + $0xe8] sm:$0xff]
    %v124 = vld [vmem:[%s1 + $0xf0] sm:$0xff]
    %v125 = vld [vmem:[%s1 + $0xf8] sm:$0xff]
    %v126 = vld [vmem:[%s1 + $0x100] sm:$0xff]
    %v127 = vld [vmem:[%s1 + $0x108] sm:$0xff]
    %v128 = vld [vmem:[%s1 + $0x110] sm:$0xff]
    %v129 = vld [vmem:[%s1 + $0x118] sm:$0xff]
    %v130 = vld [vmem:[%s1 + $0x120] sm:$0xff]
    %v131 = vld [vmem:[%s1 + $0x128] sm:$0xff]
    %v132 = vld [vmem:[%s1 + $0x130] sm:$0xff]
    %v133 = vld [vmem:[%s1 + $0x138] sm:$0xff]
    %v134 = vld [vmem:[%s1 + $0x140] sm:$0xff]
    %v135 = vld [vmem:[%s1 + $0x148] sm:$0xff]
    %v136 = vld [vmem:[%s1 + $0x150] sm:$0xff]
    %v137 = vld [vmem:[%s1 + $0x158] sm:$0xff]
    %v138 = vld [vmem:[%s1 + $0x160] sm:$0xff]
    %v139 = vld [vmem:[%s1 + $0x168] sm:$0xff]
    %v140 = vld [vmem:[%s1 + $0x170] sm:$0xff]
    %v141 = vld [vmem:[%s1 + $0x178] sm:$0xff]
    %v142 = vld [vmem:[%s1 + $0x180] sm:$0xff]
    %v143 = vld [vmem:[%s1 + $0x188] sm:$0xff]
    %v144 = vld [vmem:[%s1 + $0x190] sm:$0xff]
    %v145 = vld [vmem:[%s1 + $0x198] sm:$0xff]
    %v146 = vld [vmem:[%s1 + $0x1a0] sm:$0xff]
    %v147 = vld [vmem:[%s1 + $0x1a8] sm:$0xff]
    %v148 = vld [vmem:[%s1 + $0x1b0] sm:$0xff]
    %v149 = vld [vmem:[%s1 + $0x1b8] sm:$0xff]
    %v150 = vld [vmem:[%s1 + $0x1c0] sm:$0xff]
    %v151 = vld [vmem:[%s1 + $0x1c8] sm:$0xff]
    %v152 = vld [vmem:[%s1 + $0x1d0] sm:$0xff]
    %v153 = vld [vmem:[%s1 + $0x1d8] sm:$0xff]
    %v154 = vld [vmem:[%s1 + $0x1e0] sm:$0xff]
    %v155 = vld [vmem:[%s1 + $0x1e8] sm:$0xff]
    %v156 = vld [vmem:[%s1 + $0x1f0] sm:$0xff]
    %v157 = vld [vmem:[%s1 + $0x1f8] sm:$0xff]
    %v158 = vld [vmem:[%s1 + $0x200] sm:$0xff]
    %v159 = vld [vmem:[%s1 + $0x208] sm:$0xff]
    %v160 = vld [vmem:[%s1 + $0x210] sm:$0xff]
    %v161 = vld [vmem:[%s1 + $0x218] sm:$0xff]
    %v162 = vld [vmem:[%s1 + $0x220] sm:$0xff]
    %v163 = vld [vmem:[%s1 + $0x228] sm:$0xff]
    %v164 = vld [vmem:[%s1 + $0x230] sm:$0xff]
    %v165 = vld [vmem:[%s1 + $0x238] sm:$0xff]
    %v166 = vld [vmem:[%s1 + $0x240] sm:$0xff]
    %v167 = vld [vmem:[%s1 + $0x248] sm:$0xff]
    %v168 = vld [vmem:[%s1 + $0x250] sm:$0xff]
    %v169 = vld [vmem:[%s1 + $0x258] sm:$0xff]
    %v170 = vld [vmem:[%s1 + $0x260] sm:$0xff]
    %v171 = vld [vmem:[%s1 + $0x268] sm:$0xff]
    %v172 = vld [vmem:[%s1 + $0x270] sm:$0xff]
    %v173 = vld [vmem:[%s1 + $0x278] sm:$0xff]
    %v174 = vld [vmem:[%s1 + $0x280] sm:$0xff]
    %v175 = vld [vmem:[%s1 + $0x288] sm:$0xff]
    %v176 = vld [vmem:[%s1 + $0x290] sm:$0xff]
    %v177 = vld [vmem:[%s1 + $0x298] sm:$0xff]
    %v178 = vld [vmem:[%s1 + $0x2a0] sm:$0xff]
    %v179 = vld [vmem:[%s1 + $0x2a8] sm:$0xff]
    %v180 = vld [vmem:[%s1 + $0x2b0] sm:$0xff]
    %v181 = vld [vmem:[%s1 + $0x2b8] sm:$0xff]
    %v182 = vld [vmem:[%s1 + $0x2c0] sm:$0xff]
    %v183 = vld [vmem:[%s1 + $0x2c8] sm:$0xff]
    %v184 = vld [vmem:[%s1 + $0x2d0] sm:$0xff]
    %v185 = vld [vmem:[%s1 + $0x2d8] sm:$0xff]
    %v186 = vld [vmem:[%s1 + $0x2e0] sm:$0xff]
    %v187 = vld [vmem:[%s1 + $0x2e8] sm:$0xff]
    %v188 = vld [vmem:[%s1 + $0x2f0] sm:$0xff]
    %v189 = vld [vmem:[%s1 + $0x2f8] sm:$0xff]
    %v190 = vld [vmem:[%s1 + $0x300] sm:$0xff]
    %v191 = vld [vmem:[%s1 + $0x308] sm:$0xff]
    %v192 = vld [vmem:[%s1 + $0x310] sm:$0xff]
    %v193 = vld [vmem:[%s1 + $0x318] sm:$0xff]
    %v194 = vld [vmem:[%s1 + $0x320] sm:$0xff]
    %v195 = vld [vmem:[%s1 + $0x328] sm:$0xff]
    %v196 = vld [vmem:[%s1 + $0x330] sm:$0xff]
    %v197 = vld [vmem:[%s1 + $0x338] sm:$0xff]
    %v198 = vld [vmem:[%s1 + $0x340] sm:$0xff]
    %v199 = vld [vmem:[%s1 + $0x348] sm:$0xff]
    %v200 = vld [vmem:[%s1 + $0x350] sm:$0xff]
    %v201 = vld [vmem:[%s1 + $0x358] sm:$0xff]
    %v202 = vld [vmem:[%s1 + $0x360] sm:$0xff]
    %v203 = vld [vmem:[%s1 + $0x368] sm:$0xff]
    %v204 = vld [vmem:[%s1 + $0x370] sm:$0xff]
    %v205 = vld [vmem:[%s1 + $0x378] sm:$0xff]
    %v206 = vld [vmem:[%s1 + $0x380] sm:$0xff]
    %v207 = vld [vmem:[%s1 + $0x388] sm:$0xff]
    %v208 = vld [vmem:[%s1 + $0x390] sm:$0xff]
    %v209 = vld [vmem:[%s1 + $0x398] sm:$0xff]
    %v210 = vld [vmem:[%s1 + $0x3a0] sm:$0xff]
    %v211 = vld [vmem:[%s1 + $0x3a8] sm:$0xff]
    %v212 = vld [vmem:[%s1 + $0x3b0] sm:$0xff]
    %v213 = vld [vmem:[%s1 + $0x3b8] sm:$0xff]
    %v214 = vld [vmem:[%s1 + $0x3c0] sm:$0xff]
    %v215 = vld [vmem:[%s1 + $0x3c8] sm:$0xff]
    %v216 = vld [vmem:[%s1 + $0x3d0] sm:$0xff]
    %v217 = vld [vmem:[%s1 + $0x3d8] sm:$0xff]
    %v218 = vld [vmem:[%s1 + $0x3e0] sm:$0xff]
    %v219 = vld [vmem:[%s1 + $0x3e8] sm:$0xff]
    %v220 = vld [vmem:[%s1 + $0x3f0] sm:$0xff]
    %v221 = vld [vmem:[%s1 + $0x3f8] sm:$0xff]
    %v222 = vld [vmem:[%s1 + $0x400] sm:$0xff]
    %v223 = vld [vmem:[%s1 + $0x408] sm:$0xff]
    %v224 = vld [vmem:[%s1 + $0x410] sm:$0xff]
    %v225 = vld [vmem:[%s1 + $0x418] sm:$0xff]
    %v226 = vld [vmem:[%s1 + $0x420] sm:$0xff]
    %v227 = vld [vmem:[%s1 + $0x428] sm:$0xff]
    %v228 = vld [vmem:[%s1 + $0x430] sm:$0xff]
    %v229 = vld [vmem:[%s1 + $0x438] sm:$0xff]
    %v230 = vld [vmem:[%s1 + $0x440] sm:$0xff]
    %v231 = vld [vmem:[%s1 + $0x448] sm:$0xff]
    %v232 = vld [vmem:[%s1 + $0x450] sm:$0xff]
    %v233 = vld [vmem:[%s1 + $0x458] sm:$0xff]
    %v234 = vld [vmem:[%s1 + $0x460] sm:$0xff]
    %v235 = vld [vmem:[%s1 + $0x468] sm:$0xff]
    %v236 = vld [vmem:[%s1 + $0x470] sm:$0xff]
    %v237 = vld [vmem:[%s1 + $0x478] sm:$0xff]
    %v238 = vld [vmem:[%s1 + $0x480] sm:$0xff]
    %v239 = vld [vmem:[%s1 + $0x488] sm:$0xff]
    %v240 = vld [vmem:[%s1 + $0x490] sm:$0xff]
    %v241 = vld [vmem:[%s1 + $0x498] sm:$0xff]
    %v242 = vld [vmem:[%s1 + $0x4a0] sm:$0xff]
    %v243 = vld [vmem:[%s1 + $0x4a8] sm:$0xff]
    %v244 = vld [vmem:[%s1 + $0x4b0] sm:$0xff]
    %v245 = vld [vmem:[%s1 + $0x4b8] sm:$0xff]
    %v246 = vld [vmem:[%s1 + $0x4c0] sm:$0xff]
    %v247 = vld [vmem:[%s1 + $0x4c8] sm:$0xff]
    %v248 = vld [vmem:[%s1 + $0x4d0] sm:$0xff]
    %v249 = vld [vmem:[%s1 + $0x4d8] sm:$0xff]
    %v250 = vld [vmem:[%s1 + $0x4e0] sm:$0xff]
    %v251 = vld [vmem:[%s1 + $0x4e8] sm:$0xff]
    %v252 = vld [vmem:[%s1 + $0x4f0] sm:$0xff]
    %v253 = vld [vmem:[%s1 + $0x4f8] sm:$0xff]
    %v254 = vld [vmem:[%s1 + $0x500] sm:$0xff]
    %v255 = vld [vmem:[%s1 + $0x508] sm:$0xff]
    %v256 = vld [vmem:[%s1 + $0x510] sm:$0xff]
    %v257 = vld [vmem:[%s1 + $0x518] sm:$0xff]
    %v258 = vld [vmem:[%s1 + $0x520] sm:$0xff]
    %v259 = vld [vmem:[%s1 + $0x528] sm:$0xff]
    %v260 = vld [vmem:[%s1 + $0x530] sm:$0xff]
    %v261 = vld [vmem:[%s1 + $0x538] sm:$0xff]
    %v262 = vld [vmem:[%s1 + $0x540] sm:$0xff]
    %v263 = vld [vmem:[%s1 + $0x548] sm:$0xff]
    %v264 = vld [vmem:[%s1 + $0x550] sm:$0xff]
    %v265 = vld [vmem:[%s1 + $0x558] sm:$0xff]
    %v266 = vld [vmem:[%s1 + $0x560] sm:$0xff]
    %v267 = vld [vmem:[%s1 + $0x568] sm:$0xff]
    %v268 = vld [vmem:[%s1 + $0x570] sm:$0xff]
    %v269 = vld [vmem:[%s1 + $0x578] sm:$0xff]
    %v270 = vld [vmem:[%s1 + $0x580] sm:$0xff]
    %v271 = vld [vmem:[%s1 + $0x588] sm:$0xff]
    %v272 = vld [vmem:[%s1 + $0x590] sm:$0xff]
    %v273 = vld [vmem:[%s1 + $0x598] sm:$0xff]
    %v274 = vld [vmem:[%s1 + $0x5a0] sm:$0xff]
    %v275 = vld [vmem:[%s1 + $0x5a8] sm:$0xff]
    %v276 = vld [vmem:[%s1 + $0x5b0] sm:$0xff]
    %v277 = vld [vmem:[%s1 + $0x5b8] sm:$0xff]
    %v278 = vld [vmem:[%s1 + $0x5c0] sm:$0xff]
    %v279 = vld [vmem:[%s1 + $0x5c8] sm:$0xff]
    %v280 = vld [vmem:[%s1 + $0x5d0] sm:$0xff]
    %v281 = vld [vmem:[%s1 + $0x5d8] sm:$0xff]
    %v282 = vld [vmem:[%s1 + $0x5e0] sm:$0xff]
    %v283 = vld [vmem:[%s1 + $0x5e8] sm:$0xff]
    %v284 = vld [vmem:[%s1 + $0x5f0] sm:$0xff]
    %v285 = vld [vmem:[%s1 + $0x5f8] sm:$0xff]
    %v286 = vld [vmem:[%s1 + $0x600] sm:$0xff]
    %v287 = vld [vmem:[%s1 + $0x608] sm:$0xff]
    %v288 = vld [vmem:[%s1 + $0x610] sm:$0xff]
    %v289 = vld [vmem:[%s1 + $0x618] sm:$0xff]
    %v290 = vld [vmem:[%s1 + $0x620] sm:$0xff]
    %v291 = vld [vmem:[%s1 + $0x628] sm:$0xff]
    %v292 = vld [vmem:[%s1 + $0x630] sm:$0xff]
    %v293 = vld [vmem:[%s1 + $0x638] sm:$0xff]
    %v294 = vld [vmem:[%s1 + $0x640] sm:$0xff]
    %v295 = vld [vmem:[%s1 + $0x648] sm:$0xff]
    %v296 = vld [vmem:[%s1 + $0x650] sm:$0xff]
    %v297 = vld [vmem:[%s1 + $0x658] sm:$0xff]
    %v298 = vld [vmem:[%s1 + $0x660] sm:$0xff]
    %v299 = vld [vmem:[%s1 + $0x668] sm:$0xff]
    %v300 = vld [vmem:[%s1 + $0x670] sm:$0xff]
    %v301 = vld [vmem:[%s1 + $0x678] sm:$0xff]
    %v302 = vld [vmem:[%s1 + $0x680] sm:$0xff]
    %v303 = vld [vmem:[%s1 + $0x688] sm:$0xff]
    %v304 = vld [vmem:[%s1 + $0x690] sm:$0xff]
    %v305 = vld [vmem:[%s1 + $0x698] sm:$0xff]
    %v306 = vld [vmem:[%s1 + $0x6a0] sm:$0xff]
    %v307 = vld [vmem:[%s1 + $0x6a8] sm:$0xff]
    %v308 = vld [vmem:[%s1 + $0x6b0] sm:$0xff]
    %v309 = vld [vmem:[%s1 + $0x6b8] sm:$0xff]
    %v310 = vld [vmem:[%s1 + $0x6c0] sm:$0xff]
    %v311 = vld [vmem:[%s1 + $0x6c8] sm:$0xff]
    %v312 = vld [vmem:[%s1 + $0x6d0] sm:$0xff]
    %v313 = vld [vmem:[%s1 + $0x6d8] sm:$0xff]
    %v314 = vld [vmem:[%s1 + $0x6e0] sm:$0xff]
    %v315 = vld [vmem:[%s1 + $0x6e8] sm:$0xff]
    %v316 = vld [vmem:[%s1 + $0x6f0] sm:$0xff]
    %v317 = vld [vmem:[%s1 + $0x6f8] sm:$0xff]
    %v318 = vld [vmem:[%s1 + $0x700] sm:$0xff]
    %v319 = vld [vmem:[%s1 + $0x708] sm:$0xff]
    %v320 = vld [vmem:[%s1 + $0x710] sm:$0xff]
    %v321 = vld [vmem:[%s1 + $0x718] sm:$0xff]
    %v322 = vld [vmem:[%s1 + $0x720] sm:$0xff]
    %v323 = vld [vmem:[%s1 + $0x728] sm:$0xff]
    %v324 = vld [vmem:[%s1 + $0x730] sm:$0xff]
    %v325 = vld [vmem:[%s1 + $0x738] sm:$0xff]
    %v326 = vld [vmem:[%s1 + $0x740] sm:$0xff]
    %v327 = vld [vmem:[%s1 + $0x748] sm:$0xff]
    %v328 = vld [vmem:[%s1 + $0x750] sm:$0xff]
    %v329 = vld [vmem:[%s1 + $0x758] sm:$0xff]
    %v330 = vld [vmem:[%s1 + $0x760] sm:$0xff]
    %v331 = vld [vmem:[%s1 + $0x768] sm:$0xff]
    %v332 = vld [vmem:[%s1 + $0x770] sm:$0xff]
    %v333 = vld [vmem:[%s1 + $0x778] sm:$0xff]
    %v334 = vld [vmem:[%s1 + $0x780] sm:$0xff]
    %v335 = vld [vmem:[%s1 + $0x788] sm:$0xff]
    %v336 = vld [vmem:[%s1 + $0x790] sm:$0xff]
    %v337 = vld [vmem:[%s1 + $0x798] sm:$0xff]
    %v338 = vld [vmem:[%s1 + $0x7a0] sm:$0xff]
    %v339 = vld [vmem:[%s1 + $0x7a8] sm:$0xff]
    %v340 = vld [vmem:[%s1 + $0x7b0] sm:$0xff]
    %v341 = vld [vmem:[%s1 + $0x7b8] sm:$0xff]
    %v342 = vld [vmem:[%s1 + $0x7c0] sm:$0xff]
    %v343 = vld [vmem:[%s1 + $0x7c8] sm:$0xff]
    %v344 = vld [vmem:[%s1 + $0x7d0] sm:$0xff]
    %v345 = vld [vmem:[%s1 + $0x7d8] sm:$0xff]
    %v346 = vld [vmem:[%s1 + $0x7e0] sm:$0xff]
    %v347 = vld [vmem:[%s1 + $0x7e8] sm:$0xff]
    %v348 = vld [vmem:[%s1 + $0x7f0] sm:$0xff]
    %v349 = vld [vmem:[%s1 + $0x7f8] sm:$0xff]
    %v350 = vld [vmem:[%s2] sm:$0xf]
    %v352 = vlaneseq
    %v353 = vshrl.u32 %v352, 7
    %v354 = vsub.s32 0, %v353
    %v355 = vrot.slane %v350, %v354
    %v356 = vlaneseq
    %v357 = vshrl.u32 %v356, 7
    %v358 = vsub.s32 1, %v357
    %v359 = vrot.slane %v350, %v358
    %v360 = vlaneseq
    %v361 = vshrl.u32 %v360, 7
    %v362 = vsub.s32 2, %v361
    %v363 = vrot.slane %v350, %v362
    %v364 = vlaneseq
    %v365 = vshrl.u32 %v364, 7
    %v366 = vsub.s32 3, %v365
    %v367 = vrot.slane %v350, %v366
    %v628 = vunpack.c.l.b16 %v94
    %v629 = vunpack.c.h.b16 %v94
    %v630 = vunpack.c.l.b16 %v95
    %v631 = vunpack.c.h.b16 %v95
    %v632 = vunpack.c.l.b16 %v96
    %v633 = vunpack.c.h.b16 %v96
    %v634 = vunpack.c.l.b16 %v97
    %v635 = vunpack.c.h.b16 %v97
    %v636 = vunpack.c.l.b16 %v98
    %v637 = vunpack.c.h.b16 %v98
    %v638 = vunpack.c.l.b16 %v99
    %v639 = vunpack.c.h.b16 %v99
    %v640 = vunpack.c.l.b16 %v100
    %v641 = vunpack.c.h.b16 %v100
    %v642 = vunpack.c.l.b16 %v101
    %v643 = vunpack.c.h.b16 %v101
    %v644 = vunpack.c.l.b16 %v102
    %v645 = vunpack.c.h.b16 %v102
    %v646 = vunpack.c.l.b16 %v103
    %v647 = vunpack.c.h.b16 %v103
    %v648 = vunpack.c.l.b16 %v104
    %v649 = vunpack.c.h.b16 %v104
    %v650 = vunpack.c.l.b16 %v105
    %v651 = vunpack.c.h.b16 %v105
    %v652 = vunpack.c.l.b16 %v106
    %v653 = vunpack.c.h.b16 %v106
    %v654 = vunpack.c.l.b16 %v107
    %v655 = vunpack.c.h.b16 %v107
    %v656 = vunpack.c.l.b16 %v108
    %v657 = vunpack.c.h.b16 %v108
    %v658 = vunpack.c.l.b16 %v109
    %v659 = vunpack.c.h.b16 %v109
    %v660 = vunpack.c.l.b16 %v110
    %v661 = vunpack.c.h.b16 %v110
    %v662 = vunpack.c.l.b16 %v111
    %v663 = vunpack.c.h.b16 %v111
    %v664 = vunpack.c.l.b16 %v112
    %v665 = vunpack.c.h.b16 %v112
    %v666 = vunpack.c.l.b16 %v113
    %v667 = vunpack.c.h.b16 %v113
    %v668 = vunpack.c.l.b16 %v114
    %v669 = vunpack.c.h.b16 %v114
    %v670 = vunpack.c.l.b16 %v115
    %v671 = vunpack.c.h.b16 %v115
    %v672 = vunpack.c.l.b16 %v116
    %v673 = vunpack.c.h.b16 %v116
    %v674 = vunpack.c.l.b16 %v117
    %v675 = vunpack.c.h.b16 %v117
    %v676 = vunpack.c.l.b16 %v118
    %v677 = vunpack.c.h.b16 %v118
    %v678 = vunpack.c.l.b16 %v119
    %v679 = vunpack.c.h.b16 %v119
    %v680 = vunpack.c.l.b16 %v120
    %v681 = vunpack.c.h.b16 %v120
    %v682 = vunpack.c.l.b16 %v121
    %v683 = vunpack.c.h.b16 %v121
    %v684 = vunpack.c.l.b16 %v122
    %v685 = vunpack.c.h.b16 %v122
    %v686 = vunpack.c.l.b16 %v123
    %v687 = vunpack.c.h.b16 %v123
    %v688 = vunpack.c.l.b16 %v124
    %v689 = vunpack.c.h.b16 %v124
    %v690 = vunpack.c.l.b16 %v125
    %v691 = vunpack.c.h.b16 %v125
    %v692 = vunpack.c.l.b16 %v126
    %v693 = vunpack.c.h.b16 %v126
    %v694 = vunpack.c.l.b16 %v127
    %v695 = vunpack.c.h.b16 %v127
    %v696 = vunpack.c.l.b16 %v128
    %v697 = vunpack.c.h.b16 %v128
    %v698 = vunpack.c.l.b16 %v129
    %v699 = vunpack.c.h.b16 %v129
    %v700 = vunpack.c.l.b16 %v130
    %v701 = vunpack.c.h.b16 %v130
    %v702 = vunpack.c.l.b16 %v131
    %v703 = vunpack.c.h.b16 %v131
    %v704 = vunpack.c.l.b16 %v132
    %v705 = vunpack.c.h.b16 %v132
    %v706 = vunpack.c.l.b16 %v133
    %v707 = vunpack.c.h.b16 %v133
    %v708 = vunpack.c.l.b16 %v134
    %v709 = vunpack.c.h.b16 %v134
    %v710 = vunpack.c.l.b16 %v135
    %v711 = vunpack.c.h.b16 %v135
    %v712 = vunpack.c.l.b16 %v136
    %v713 = vunpack.c.h.b16 %v136
    %v714 = vunpack.c.l.b16 %v137
    %v715 = vunpack.c.h.b16 %v137
    %v716 = vunpack.c.l.b16 %v138
    %v717 = vunpack.c.h.b16 %v138
    %v718 = vunpack.c.l.b16 %v139
    %v719 = vunpack.c.h.b16 %v139
    %v720 = vunpack.c.l.b16 %v140
    %v721 = vunpack.c.h.b16 %v140
    %v722 = vunpack.c.l.b16 %v141
    %v723 = vunpack.c.h.b16 %v141
    %v724 = vunpack.c.l.b16 %v142
    %v725 = vunpack.c.h.b16 %v142
    %v726 = vunpack.c.l.b16 %v143
    %v727 = vunpack.c.h.b16 %v143
    %v728 = vunpack.c.l.b16 %v144
    %v729 = vunpack.c.h.b16 %v144
    %v730 = vunpack.c.l.b16 %v145
    %v731 = vunpack.c.h.b16 %v145
    %v732 = vunpack.c.l.b16 %v146
    %v733 = vunpack.c.h.b16 %v146
    %v734 = vunpack.c.l.b16 %v147
    %v735 = vunpack.c.h.b16 %v147
    %v736 = vunpack.c.l.b16 %v148
    %v737 = vunpack.c.h.b16 %v148
    %v738 = vunpack.c.l.b16 %v149
    %v739 = vunpack.c.h.b16 %v149
    %v740 = vunpack.c.l.b16 %v150
    %v741 = vunpack.c.h.b16 %v150
    %v742 = vunpack.c.l.b16 %v151
    %v743 = vunpack.c.h.b16 %v151
    %v744 = vunpack.c.l.b16 %v152
    %v745 = vunpack.c.h.b16 %v152
    %v746 = vunpack.c.l.b16 %v153
    %v747 = vunpack.c.h.b16 %v153
    %v748 = vunpack.c.l.b16 %v154
    %v749 = vunpack.c.h.b16 %v154
    %v750 = vunpack.c.l.b16 %v155
    %v751 = vunpack.c.h.b16 %v155
    %v752 = vunpack.c.l.b16 %v156
    %v753 = vunpack.c.h.b16 %v156
    %v754 = vunpack.c.l.b16 %v157
    %v755 = vunpack.c.h.b16 %v157
    %v756 = vunpack.c.l.b16 %v158
    %v757 = vunpack.c.h.b16 %v158
    %v758 = vunpack.c.l.b16 %v159
    %v759 = vunpack.c.h.b16 %v159
    %v760 = vunpack.c.l.b16 %v160
    %v761 = vunpack.c.h.b16 %v160
    %v762 = vunpack.c.l.b16 %v161
    %v763 = vunpack.c.h.b16 %v161
    %v764 = vunpack.c.l.b16 %v162
    %v765 = vunpack.c.h.b16 %v162
    %v766 = vunpack.c.l.b16 %v163
    %v767 = vunpack.c.h.b16 %v163
    %v768 = vunpack.c.l.b16 %v164
    %v769 = vunpack.c.h.b16 %v164
    %v770 = vunpack.c.l.b16 %v165
    %v771 = vunpack.c.h.b16 %v165
    %v772 = vunpack.c.l.b16 %v166
    %v773 = vunpack.c.h.b16 %v166
    %v774 = vunpack.c.l.b16 %v167
    %v775 = vunpack.c.h.b16 %v167
    %v776 = vunpack.c.l.b16 %v168
    %v777 = vunpack.c.h.b16 %v168
    %v778 = vunpack.c.l.b16 %v169
    %v779 = vunpack.c.h.b16 %v169
    %v780 = vunpack.c.l.b16 %v170
    %v781 = vunpack.c.h.b16 %v170
    %v782 = vunpack.c.l.b16 %v171
    %v783 = vunpack.c.h.b16 %v171
    %v784 = vunpack.c.l.b16 %v172
    %v785 = vunpack.c.h.b16 %v172
    %v786 = vunpack.c.l.b16 %v173
    %v787 = vunpack.c.h.b16 %v173
    %v788 = vunpack.c.l.b16 %v174
    %v789 = vunpack.c.h.b16 %v174
    %v790 = vunpack.c.l.b16 %v175
    %v791 = vunpack.c.h.b16 %v175
    %v792 = vunpack.c.l.b16 %v176
    %v793 = vunpack.c.h.b16 %v176
    %v794 = vunpack.c.l.b16 %v177
    %v795 = vunpack.c.h.b16 %v177
    %v796 = vunpack.c.l.b16 %v178
    %v797 = vunpack.c.h.b16 %v178
    %v798 = vunpack.c.l.b16 %v179
    %v799 = vunpack.c.h.b16 %v179
    %v800 = vunpack.c.l.b16 %v180
    %v801 = vunpack.c.h.b16 %v180
    %v802 = vunpack.c.l.b16 %v181
    %v803 = vunpack.c.h.b16 %v181
    %v804 = vunpack.c.l.b16 %v182
    %v805 = vunpack.c.h.b16 %v182
    %v806 = vunpack.c.l.b16 %v183
    %v807 = vunpack.c.h.b16 %v183
    %v808 = vunpack.c.l.b16 %v184
    %v809 = vunpack.c.h.b16 %v184
    %v810 = vunpack.c.l.b16 %v185
    %v811 = vunpack.c.h.b16 %v185
    %v812 = vunpack.c.l.b16 %v186
    %v813 = vunpack.c.h.b16 %v186
    %v814 = vunpack.c.l.b16 %v187
    %v815 = vunpack.c.h.b16 %v187
    %v816 = vunpack.c.l.b16 %v188
    %v817 = vunpack.c.h.b16 %v188
    %v818 = vunpack.c.l.b16 %v189
    %v819 = vunpack.c.h.b16 %v189
    %v820 = vunpack.c.l.b16 %v190
    %v821 = vunpack.c.h.b16 %v190
    %v822 = vunpack.c.l.b16 %v191
    %v823 = vunpack.c.h.b16 %v191
    %v824 = vunpack.c.l.b16 %v192
    %v825 = vunpack.c.h.b16 %v192
    %v826 = vunpack.c.l.b16 %v193
    %v827 = vunpack.c.h.b16 %v193
    %v828 = vunpack.c.l.b16 %v194
    %v829 = vunpack.c.h.b16 %v194
    %v830 = vunpack.c.l.b16 %v195
    %v831 = vunpack.c.h.b16 %v195
    %v832 = vunpack.c.l.b16 %v196
    %v833 = vunpack.c.h.b16 %v196
    %v834 = vunpack.c.l.b16 %v197
    %v835 = vunpack.c.h.b16 %v197
    %v836 = vunpack.c.l.b16 %v198
    %v837 = vunpack.c.h.b16 %v198
    %v838 = vunpack.c.l.b16 %v199
    %v839 = vunpack.c.h.b16 %v199
    %v840 = vunpack.c.l.b16 %v200
    %v841 = vunpack.c.h.b16 %v200
    %v842 = vunpack.c.l.b16 %v201
    %v843 = vunpack.c.h.b16 %v201
    %v844 = vunpack.c.l.b16 %v202
    %v845 = vunpack.c.h.b16 %v202
    %v846 = vunpack.c.l.b16 %v203
    %v847 = vunpack.c.h.b16 %v203
    %v848 = vunpack.c.l.b16 %v204
    %v849 = vunpack.c.h.b16 %v204
    %v850 = vunpack.c.l.b16 %v205
    %v851 = vunpack.c.h.b16 %v205
    %v852 = vunpack.c.l.b16 %v206
    %v853 = vunpack.c.h.b16 %v206
    %v854 = vunpack.c.l.b16 %v207
    %v855 = vunpack.c.h.b16 %v207
    %v856 = vunpack.c.l.b16 %v208
    %v857 = vunpack.c.h.b16 %v208
    %v858 = vunpack.c.l.b16 %v209
    %v859 = vunpack.c.h.b16 %v209
    %v860 = vunpack.c.l.b16 %v210
    %v861 = vunpack.c.h.b16 %v210
    %v862 = vunpack.c.l.b16 %v211
    %v863 = vunpack.c.h.b16 %v211
    %v864 = vunpack.c.l.b16 %v212
    %v865 = vunpack.c.h.b16 %v212
    %v866 = vunpack.c.l.b16 %v213
    %v867 = vunpack.c.h.b16 %v213
    %v868 = vunpack.c.l.b16 %v214
    %v869 = vunpack.c.h.b16 %v214
    %v870 = vunpack.c.l.b16 %v215
    %v871 = vunpack.c.h.b16 %v215
    %v872 = vunpack.c.l.b16 %v216
    %v873 = vunpack.c.h.b16 %v216
    %v874 = vunpack.c.l.b16 %v217
    %v875 = vunpack.c.h.b16 %v217
    %v876 = vunpack.c.l.b16 %v218
    %v877 = vunpack.c.h.b16 %v218
    %v878 = vunpack.c.l.b16 %v219
    %v879 = vunpack.c.h.b16 %v219
    %v880 = vunpack.c.l.b16 %v220
    %v881 = vunpack.c.h.b16 %v220
    %v882 = vunpack.c.l.b16 %v221
    %v883 = vunpack.c.h.b16 %v221
    %v884 = vunpack.c.l.b16 %v222
    %v885 = vunpack.c.h.b16 %v222
    %v886 = vunpack.c.l.b16 %v223
    %v887 = vunpack.c.h.b16 %v223
    %v888 = vunpack.c.l.b16 %v224
    %v889 = vunpack.c.h.b16 %v224
    %v890 = vunpack.c.l.b16 %v225
    %v891 = vunpack.c.h.b16 %v225
    %v892 = vunpack.c.l.b16 %v226
    %v893 = vunpack.c.h.b16 %v226
    %v894 = vunpack.c.l.b16 %v227
    %v895 = vunpack.c.h.b16 %v227
    %v896 = vunpack.c.l.b16 %v228
    %v897 = vunpack.c.h.b16 %v228
    %v898 = vunpack.c.l.b16 %v229
    %v899 = vunpack.c.h.b16 %v229
    %v900 = vunpack.c.l.b16 %v230
    %v901 = vunpack.c.h.b16 %v230
    %v902 = vunpack.c.l.b16 %v231
    %v903 = vunpack.c.h.b16 %v231
    %v904 = vunpack.c.l.b16 %v232
    %v905 = vunpack.c.h.b16 %v232
    %v906 = vunpack.c.l.b16 %v233
    %v907 = vunpack.c.h.b16 %v233
    %v908 = vunpack.c.l.b16 %v234
    %v909 = vunpack.c.h.b16 %v234
    %v910 = vunpack.c.l.b16 %v235
    %v911 = vunpack.c.h.b16 %v235
    %v912 = vunpack.c.l.b16 %v236
    %v913 = vunpack.c.h.b16 %v236
    %v914 = vunpack.c.l.b16 %v237
    %v915 = vunpack.c.h.b16 %v237
    %v916 = vunpack.c.l.b16 %v238
    %v917 = vunpack.c.h.b16 %v238
    %v918 = vunpack.c.l.b16 %v239
    %v919 = vunpack.c.h.b16 %v239
    %v920 = vunpack.c.l.b16 %v240
    %v921 = vunpack.c.h.b16 %v240
    %v922 = vunpack.c.l.b16 %v241
    %v923 = vunpack.c.h.b16 %v241
    %v924 = vunpack.c.l.b16 %v242
    %v925 = vunpack.c.h.b16 %v242
    %v926 = vunpack.c.l.b16 %v243
    %v927 = vunpack.c.h.b16 %v243
    %v928 = vunpack.c.l.b16 %v244
    %v929 = vunpack.c.h.b16 %v244
    %v930 = vunpack.c.l.b16 %v245
    %v931 = vunpack.c.h.b16 %v245
    %v932 = vunpack.c.l.b16 %v246
    %v933 = vunpack.c.h.b16 %v246
    %v934 = vunpack.c.l.b16 %v247
    %v935 = vunpack.c.h.b16 %v247
    %v936 = vunpack.c.l.b16 %v248
    %v937 = vunpack.c.h.b16 %v248
    %v938 = vunpack.c.l.b16 %v249
    %v939 = vunpack.c.h.b16 %v249
    %v940 = vunpack.c.l.b16 %v250
    %v941 = vunpack.c.h.b16 %v250
    %v942 = vunpack.c.l.b16 %v251
    %v943 = vunpack.c.h.b16 %v251
    %v944 = vunpack.c.l.b16 %v252
    %v945 = vunpack.c.h.b16 %v252
    %v946 = vunpack.c.l.b16 %v253
    %v947 = vunpack.c.h.b16 %v253
    %v948 = vunpack.c.l.b16 %v254
    %v949 = vunpack.c.h.b16 %v254
    %v950 = vunpack.c.l.b16 %v255
    %v951 = vunpack.c.h.b16 %v255
    %v952 = vunpack.c.l.b16 %v256
    %v953 = vunpack.c.h.b16 %v256
    %v954 = vunpack.c.l.b16 %v257
    %v955 = vunpack.c.h.b16 %v257
    %v956 = vunpack.c.l.b16 %v258
    %v957 = vunpack.c.h.b16 %v258
    %v958 = vunpack.c.l.b16 %v259
    %v959 = vunpack.c.h.b16 %v259
    %v960 = vunpack.c.l.b16 %v260
    %v961 = vunpack.c.h.b16 %v260
    %v962 = vunpack.c.l.b16 %v261
    %v963 = vunpack.c.h.b16 %v261
    %v964 = vunpack.c.l.b16 %v262
    %v965 = vunpack.c.h.b16 %v262
    %v966 = vunpack.c.l.b16 %v263
    %v967 = vunpack.c.h.b16 %v263
    %v968 = vunpack.c.l.b16 %v264
    %v969 = vunpack.c.h.b16 %v264
    %v970 = vunpack.c.l.b16 %v265
    %v971 = vunpack.c.h.b16 %v265
    %v972 = vunpack.c.l.b16 %v266
    %v973 = vunpack.c.h.b16 %v266
    %v974 = vunpack.c.l.b16 %v267
    %v975 = vunpack.c.h.b16 %v267
    %v976 = vunpack.c.l.b16 %v268
    %v977 = vunpack.c.h.b16 %v268
    %v978 = vunpack.c.l.b16 %v269
    %v979 = vunpack.c.h.b16 %v269
    %v980 = vunpack.c.l.b16 %v270
    %v981 = vunpack.c.h.b16 %v270
    %v982 = vunpack.c.l.b16 %v271
    %v983 = vunpack.c.h.b16 %v271
    %v984 = vunpack.c.l.b16 %v272
    %v985 = vunpack.c.h.b16 %v272
    %v986 = vunpack.c.l.b16 %v273
    %v987 = vunpack.c.h.b16 %v273
    %v988 = vunpack.c.l.b16 %v274
    %v989 = vunpack.c.h.b16 %v274
    %v990 = vunpack.c.l.b16 %v275
    %v991 = vunpack.c.h.b16 %v275
    %v992 = vunpack.c.l.b16 %v276
    %v993 = vunpack.c.h.b16 %v276
    %v994 = vunpack.c.l.b16 %v277
    %v995 = vunpack.c.h.b16 %v277
    %v996 = vunpack.c.l.b16 %v278
    %v997 = vunpack.c.h.b16 %v278
    %v998 = vunpack.c.l.b16 %v279
    %v999 = vunpack.c.h.b16 %v279
    %v1000 = vunpack.c.l.b16 %v280
    %v1001 = vunpack.c.h.b16 %v280
    %v1002 = vunpack.c.l.b16 %v281
    %v1003 = vunpack.c.h.b16 %v281
    %v1004 = vunpack.c.l.b16 %v282
    %v1005 = vunpack.c.h.b16 %v282
    %v1006 = vunpack.c.l.b16 %v283
    %v1007 = vunpack.c.h.b16 %v283
    %v1008 = vunpack.c.l.b16 %v284
    %v1009 = vunpack.c.h.b16 %v284
    %v1010 = vunpack.c.l.b16 %v285
    %v1011 = vunpack.c.h.b16 %v285
    %v1012 = vunpack.c.l.b16 %v286
    %v1013 = vunpack.c.h.b16 %v286
    %v1014 = vunpack.c.l.b16 %v287
    %v1015 = vunpack.c.h.b16 %v287
    %v1016 = vunpack.c.l.b16 %v288
    %v1017 = vunpack.c.h.b16 %v288
    %v1018 = vunpack.c.l.b16 %v289
    %v1019 = vunpack.c.h.b16 %v289
    %v1020 = vunpack.c.l.b16 %v290
    %v1021 = vunpack.c.h.b16 %v290
    %v1022 = vunpack.c.l.b16 %v291
    %v1023 = vunpack.c.h.b16 %v291
    %v1024 = vunpack.c.l.b16 %v292
    %v1025 = vunpack.c.h.b16 %v292
    %v1026 = vunpack.c.l.b16 %v293
    %v1027 = vunpack.c.h.b16 %v293
    %v1028 = vunpack.c.l.b16 %v294
    %v1029 = vunpack.c.h.b16 %v294
    %v1030 = vunpack.c.l.b16 %v295
    %v1031 = vunpack.c.h.b16 %v295
    %v1032 = vunpack.c.l.b16 %v296
    %v1033 = vunpack.c.h.b16 %v296
    %v1034 = vunpack.c.l.b16 %v297
    %v1035 = vunpack.c.h.b16 %v297
    %v1036 = vunpack.c.l.b16 %v298
    %v1037 = vunpack.c.h.b16 %v298
    %v1038 = vunpack.c.l.b16 %v299
    %v1039 = vunpack.c.h.b16 %v299
    %v1040 = vunpack.c.l.b16 %v300
    %v1041 = vunpack.c.h.b16 %v300
    %v1042 = vunpack.c.l.b16 %v301
    %v1043 = vunpack.c.h.b16 %v301
    %v1044 = vunpack.c.l.b16 %v302
    %v1045 = vunpack.c.h.b16 %v302
    %v1046 = vunpack.c.l.b16 %v303
    %v1047 = vunpack.c.h.b16 %v303
    %v1048 = vunpack.c.l.b16 %v304
    %v1049 = vunpack.c.h.b16 %v304
    %v1050 = vunpack.c.l.b16 %v305
    %v1051 = vunpack.c.h.b16 %v305
    %v1052 = vunpack.c.l.b16 %v306
    %v1053 = vunpack.c.h.b16 %v306
    %v1054 = vunpack.c.l.b16 %v307
    %v1055 = vunpack.c.h.b16 %v307
    %v1056 = vunpack.c.l.b16 %v308
    %v1057 = vunpack.c.h.b16 %v308
    %v1058 = vunpack.c.l.b16 %v309
    %v1059 = vunpack.c.h.b16 %v309
    %v1060 = vunpack.c.l.b16 %v310
    %v1061 = vunpack.c.h.b16 %v310
    %v1062 = vunpack.c.l.b16 %v311
    %v1063 = vunpack.c.h.b16 %v311
    %v1064 = vunpack.c.l.b16 %v312
    %v1065 = vunpack.c.h.b16 %v312
    %v1066 = vunpack.c.l.b16 %v313
    %v1067 = vunpack.c.h.b16 %v313
    %v1068 = vunpack.c.l.b16 %v314
    %v1069 = vunpack.c.h.b16 %v314
    %v1070 = vunpack.c.l.b16 %v315
    %v1071 = vunpack.c.h.b16 %v315
    %v1072 = vunpack.c.l.b16 %v316
    %v1073 = vunpack.c.h.b16 %v316
    %v1074 = vunpack.c.l.b16 %v317
    %v1075 = vunpack.c.h.b16 %v317
    %v1076 = vunpack.c.l.b16 %v318
    %v1077 = vunpack.c.h.b16 %v318
    %v1078 = vunpack.c.l.b16 %v319
    %v1079 = vunpack.c.h.b16 %v319
    %v1080 = vunpack.c.l.b16 %v320
    %v1081 = vunpack.c.h.b16 %v320
    %v1082 = vunpack.c.l.b16 %v321
    %v1083 = vunpack.c.h.b16 %v321
    %v1084 = vunpack.c.l.b16 %v322
    %v1085 = vunpack.c.h.b16 %v322
    %v1086 = vunpack.c.l.b16 %v323
    %v1087 = vunpack.c.h.b16 %v323
    %v1088 = vunpack.c.l.b16 %v324
    %v1089 = vunpack.c.h.b16 %v324
    %v1090 = vunpack.c.l.b16 %v325
    %v1091 = vunpack.c.h.b16 %v325
    %v1092 = vunpack.c.l.b16 %v326
    %v1093 = vunpack.c.h.b16 %v326
    %v1094 = vunpack.c.l.b16 %v327
    %v1095 = vunpack.c.h.b16 %v327
    %v1096 = vunpack.c.l.b16 %v328
    %v1097 = vunpack.c.h.b16 %v328
    %v1098 = vunpack.c.l.b16 %v329
    %v1099 = vunpack.c.h.b16 %v329
    %v1100 = vunpack.c.l.b16 %v330
    %v1101 = vunpack.c.h.b16 %v330
    %v1102 = vunpack.c.l.b16 %v331
    %v1103 = vunpack.c.h.b16 %v331
    %v1104 = vunpack.c.l.b16 %v332
    %v1105 = vunpack.c.h.b16 %v332
    %v1106 = vunpack.c.l.b16 %v333
    %v1107 = vunpack.c.h.b16 %v333
    %v1108 = vunpack.c.l.b16 %v334
    %v1109 = vunpack.c.h.b16 %v334
    %v1110 = vunpack.c.l.b16 %v335
    %v1111 = vunpack.c.h.b16 %v335
    %v1112 = vunpack.c.l.b16 %v336
    %v1113 = vunpack.c.h.b16 %v336
    %v1114 = vunpack.c.l.b16 %v337
    %v1115 = vunpack.c.h.b16 %v337
    %v1116 = vunpack.c.l.b16 %v338
    %v1117 = vunpack.c.h.b16 %v338
    %v1118 = vunpack.c.l.b16 %v339
    %v1119 = vunpack.c.h.b16 %v339
    %v1120 = vunpack.c.l.b16 %v340
    %v1121 = vunpack.c.h.b16 %v340
    %v1122 = vunpack.c.l.b16 %v341
    %v1123 = vunpack.c.h.b16 %v341
    %v1124 = vunpack.c.l.b16 %v342
    %v1125 = vunpack.c.h.b16 %v342
    %v1126 = vunpack.c.l.b16 %v343
    %v1127 = vunpack.c.h.b16 %v343
    %v1128 = vunpack.c.l.b16 %v344
    %v1129 = vunpack.c.h.b16 %v344
    %v1130 = vunpack.c.l.b16 %v345
    %v1131 = vunpack.c.h.b16 %v345
    %v1132 = vunpack.c.l.b16 %v346
    %v1133 = vunpack.c.h.b16 %v346
    %v1134 = vunpack.c.l.b16 %v347
    %v1135 = vunpack.c.h.b16 %v347
    %v1136 = vunpack.c.l.b16 %v348
    %v1137 = vunpack.c.h.b16 %v348
    %v1138 = vunpack.c.l.b16 %v349
    %v1139 = vunpack.c.h.b16 %v349
    %v1140 = vpack.c.b16 %v632, %v628
    %v1141 = vpack.c.b16 %v633, %v629
    %v1142 = vpack.c.b16 %v634, %v630
    %v1143 = vpack.c.b16 %v635, %v631
    %v1144 = vpack.c.b16 %v640, %v636
    %v1145 = vpack.c.b16 %v641, %v637
    %v1146 = vpack.c.b16 %v642, %v638
    %v1147 = vpack.c.b16 %v643, %v639
    %v1148 = vpack.c.b16 %v648, %v644
    %v1149 = vpack.c.b16 %v649, %v645
    %v1150 = vpack.c.b16 %v650, %v646
    %v1151 = vpack.c.b16 %v651, %v647
    %v1152 = vpack.c.b16 %v656, %v652
    %v1153 = vpack.c.b16 %v657, %v653
    %v1154 = vpack.c.b16 %v658, %v654
    %v1155 = vpack.c.b16 %v659, %v655
    %v1156 = vpack.c.b16 %v664, %v660
    %v1157 = vpack.c.b16 %v665, %v661
    %v1158 = vpack.c.b16 %v666, %v662
    %v1159 = vpack.c.b16 %v667, %v663
    %v1160 = vpack.c.b16 %v672, %v668
    %v1161 = vpack.c.b16 %v673, %v669
    %v1162 = vpack.c.b16 %v674, %v670
    %v1163 = vpack.c.b16 %v675, %v671
    %v1164 = vpack.c.b16 %v680, %v676
    %v1165 = vpack.c.b16 %v681, %v677
    %v1166 = vpack.c.b16 %v682, %v678
    %v1167 = vpack.c.b16 %v683, %v679
    %v1168 = vpack.c.b16 %v688, %v684
    %v1169 = vpack.c.b16 %v689, %v685
    %v1170 = vpack.c.b16 %v690, %v686
    %v1171 = vpack.c.b16 %v691, %v687
    %v1172 = vpack.c.b16 %v696, %v692
    %v1173 = vpack.c.b16 %v697, %v693
    %v1174 = vpack.c.b16 %v698, %v694
    %v1175 = vpack.c.b16 %v699, %v695
    %v1176 = vpack.c.b16 %v704, %v700
    %v1177 = vpack.c.b16 %v705, %v701
    %v1178 = vpack.c.b16 %v706, %v702
    %v1179 = vpack.c.b16 %v707, %v703
    %v1180 = vpack.c.b16 %v712, %v708
    %v1181 = vpack.c.b16 %v713, %v709
    %v1182 = vpack.c.b16 %v714, %v710
    %v1183 = vpack.c.b16 %v715, %v711
    %v1184 = vpack.c.b16 %v720, %v716
    %v1185 = vpack.c.b16 %v721, %v717
    %v1186 = vpack.c.b16 %v722, %v718
    %v1187 = vpack.c.b16 %v723, %v719
    %v1188 = vpack.c.b16 %v728, %v724
    %v1189 = vpack.c.b16 %v729, %v725
    %v1190 = vpack.c.b16 %v730, %v726
    %v1191 = vpack.c.b16 %v731, %v727
    %v1192 = vpack.c.b16 %v736, %v732
    %v1193 = vpack.c.b16 %v737, %v733
    %v1194 = vpack.c.b16 %v738, %v734
    %v1195 = vpack.c.b16 %v739, %v735
    %v1196 = vpack.c.b16 %v744, %v740
    %v1197 = vpack.c.b16 %v745, %v741
    %v1198 = vpack.c.b16 %v746, %v742
    %v1199 = vpack.c.b16 %v747, %v743
    %v1200 = vpack.c.b16 %v752, %v748
    %v1201 = vpack.c.b16 %v753, %v749
    %v1202 = vpack.c.b16 %v754, %v750
    %v1203 = vpack.c.b16 %v755, %v751
    %v1204 = vpack.c.b16 %v760, %v756
    %v1205 = vpack.c.b16 %v761, %v757
    %v1206 = vpack.c.b16 %v762, %v758
    %v1207 = vpack.c.b16 %v763, %v759
    %v1208 = vpack.c.b16 %v768, %v764
    %v1209 = vpack.c.b16 %v769, %v765
    %v1210 = vpack.c.b16 %v770, %v766
    %v1211 = vpack.c.b16 %v771, %v767
    %v1212 = vpack.c.b16 %v776, %v772
    %v1213 = vpack.c.b16 %v777, %v773
    %v1214 = vpack.c.b16 %v778, %v774
    %v1215 = vpack.c.b16 %v779, %v775
    %v1216 = vpack.c.b16 %v784, %v780
    %v1217 = vpack.c.b16 %v785, %v781
    %v1218 = vpack.c.b16 %v786, %v782
    %v1219 = vpack.c.b16 %v787, %v783
    %v1220 = vpack.c.b16 %v792, %v788
    %v1221 = vpack.c.b16 %v793, %v789
    %v1222 = vpack.c.b16 %v794, %v790
    %v1223 = vpack.c.b16 %v795, %v791
    %v1224 = vpack.c.b16 %v800, %v796
    %v1225 = vpack.c.b16 %v801, %v797
    %v1226 = vpack.c.b16 %v802, %v798
    %v1227 = vpack.c.b16 %v803, %v799
    %v1228 = vpack.c.b16 %v808, %v804
    %v1229 = vpack.c.b16 %v809, %v805
    %v1230 = vpack.c.b16 %v810, %v806
    %v1231 = vpack.c.b16 %v811, %v807
    %v1232 = vpack.c.b16 %v816, %v812
    %v1233 = vpack.c.b16 %v817, %v813
    %v1234 = vpack.c.b16 %v818, %v814
    %v1235 = vpack.c.b16 %v819, %v815
    %v1236 = vpack.c.b16 %v824, %v820
    %v1237 = vpack.c.b16 %v825, %v821
    %v1238 = vpack.c.b16 %v826, %v822
    %v1239 = vpack.c.b16 %v827, %v823
    %v1240 = vpack.c.b16 %v832, %v828
    %v1241 = vpack.c.b16 %v833, %v829
    %v1242 = vpack.c.b16 %v834, %v830
    %v1243 = vpack.c.b16 %v835, %v831
    %v1244 = vpack.c.b16 %v840, %v836
    %v1245 = vpack.c.b16 %v841, %v837
    %v1246 = vpack.c.b16 %v842, %v838
    %v1247 = vpack.c.b16 %v843, %v839
    %v1248 = vpack.c.b16 %v848, %v844
    %v1249 = vpack.c.b16 %v849, %v845
    %v1250 = vpack.c.b16 %v850, %v846
    %v1251 = vpack.c.b16 %v851, %v847
    %v1252 = vpack.c.b16 %v856, %v852
    %v1253 = vpack.c.b16 %v857, %v853
    %v1254 = vpack.c.b16 %v858, %v854
    %v1255 = vpack.c.b16 %v859, %v855
    %v1256 = vpack.c.b16 %v864, %v860
    %v1257 = vpack.c.b16 %v865, %v861
    %v1258 = vpack.c.b16 %v866, %v862
    %v1259 = vpack.c.b16 %v867, %v863
    %v1260 = vpack.c.b16 %v872, %v868
    %v1261 = vpack.c.b16 %v873, %v869
    %v1262 = vpack.c.b16 %v874, %v870
    %v1263 = vpack.c.b16 %v875, %v871
    %v1264 = vpack.c.b16 %v880, %v876
    %v1265 = vpack.c.b16 %v881, %v877
    %v1266 = vpack.c.b16 %v882, %v878
    %v1267 = vpack.c.b16 %v883, %v879
    %v1268 = vpack.c.b16 %v888, %v884
    %v1269 = vpack.c.b16 %v889, %v885
    %v1270 = vpack.c.b16 %v890, %v886
    %v1271 = vpack.c.b16 %v891, %v887
    %v1272 = vpack.c.b16 %v896, %v892
    %v1273 = vpack.c.b16 %v897, %v893
    %v1274 = vpack.c.b16 %v898, %v894
    %v1275 = vpack.c.b16 %v899, %v895
    %v1276 = vpack.c.b16 %v904, %v900
    %v1277 = vpack.c.b16 %v905, %v901
    %v1278 = vpack.c.b16 %v906, %v902
    %v1279 = vpack.c.b16 %v907, %v903
    %v1280 = vpack.c.b16 %v912, %v908
    %v1281 = vpack.c.b16 %v913, %v909
    %v1282 = vpack.c.b16 %v914, %v910
    %v1283 = vpack.c.b16 %v915, %v911
    %v1284 = vpack.c.b16 %v920, %v916
    %v1285 = vpack.c.b16 %v921, %v917
    %v1286 = vpack.c.b16 %v922, %v918
    %v1287 = vpack.c.b16 %v923, %v919
    %v1288 = vpack.c.b16 %v928, %v924
    %v1289 = vpack.c.b16 %v929, %v925
    %v1290 = vpack.c.b16 %v930, %v926
    %v1291 = vpack.c.b16 %v931, %v927
    %v1292 = vpack.c.b16 %v936, %v932
    %v1293 = vpack.c.b16 %v937, %v933
    %v1294 = vpack.c.b16 %v938, %v934
    %v1295 = vpack.c.b16 %v939, %v935
    %v1296 = vpack.c.b16 %v944, %v940
    %v1297 = vpack.c.b16 %v945, %v941
    %v1298 = vpack.c.b16 %v946, %v942
    %v1299 = vpack.c.b16 %v947, %v943
    %v1300 = vpack.c.b16 %v952, %v948
    %v1301 = vpack.c.b16 %v953, %v949
    %v1302 = vpack.c.b16 %v954, %v950
    %v1303 = vpack.c.b16 %v955, %v951
    %v1304 = vpack.c.b16 %v960, %v956
    %v1305 = vpack.c.b16 %v961, %v957
    %v1306 = vpack.c.b16 %v962, %v958
    %v1307 = vpack.c.b16 %v963, %v959
    %v1308 = vpack.c.b16 %v968, %v964
    %v1309 = vpack.c.b16 %v969, %v965
    %v1310 = vpack.c.b16 %v970, %v966
    %v1311 = vpack.c.b16 %v971, %v967
    %v1312 = vpack.c.b16 %v976, %v972
    %v1313 = vpack.c.b16 %v977, %v973
    %v1314 = vpack.c.b16 %v978, %v974
    %v1315 = vpack.c.b16 %v979, %v975
    %v1316 = vpack.c.b16 %v984, %v980
    %v1317 = vpack.c.b16 %v985, %v981
    %v1318 = vpack.c.b16 %v986, %v982
    %v1319 = vpack.c.b16 %v987, %v983
    %v1320 = vpack.c.b16 %v992, %v988
    %v1321 = vpack.c.b16 %v993, %v989
    %v1322 = vpack.c.b16 %v994, %v990
    %v1323 = vpack.c.b16 %v995, %v991
    %v1324 = vpack.c.b16 %v1000, %v996
    %v1325 = vpack.c.b16 %v1001, %v997
    %v1326 = vpack.c.b16 %v1002, %v998
    %v1327 = vpack.c.b16 %v1003, %v999
    %v1328 = vpack.c.b16 %v1008, %v1004
    %v1329 = vpack.c.b16 %v1009, %v1005
    %v1330 = vpack.c.b16 %v1010, %v1006
    %v1331 = vpack.c.b16 %v1011, %v1007
    %v1332 = vpack.c.b16 %v1016, %v1012
    %v1333 = vpack.c.b16 %v1017, %v1013
    %v1334 = vpack.c.b16 %v1018, %v1014
    %v1335 = vpack.c.b16 %v1019, %v1015
    %v1336 = vpack.c.b16 %v1024, %v1020
    %v1337 = vpack.c.b16 %v1025, %v1021
    %v1338 = vpack.c.b16 %v1026, %v1022
    %v1339 = vpack.c.b16 %v1027, %v1023
    %v1340 = vpack.c.b16 %v1032, %v1028
    %v1341 = vpack.c.b16 %v1033, %v1029
    %v1342 = vpack.c.b16 %v1034, %v1030
    %v1343 = vpack.c.b16 %v1035, %v1031
    %v1344 = vpack.c.b16 %v1040, %v1036
    %v1345 = vpack.c.b16 %v1041, %v1037
    %v1346 = vpack.c.b16 %v1042, %v1038
    %v1347 = vpack.c.b16 %v1043, %v1039
    %v1348 = vpack.c.b16 %v1048, %v1044
    %v1349 = vpack.c.b16 %v1049, %v1045
    %v1350 = vpack.c.b16 %v1050, %v1046
    %v1351 = vpack.c.b16 %v1051, %v1047
    %v1352 = vpack.c.b16 %v1056, %v1052
    %v1353 = vpack.c.b16 %v1057, %v1053
    %v1354 = vpack.c.b16 %v1058, %v1054
    %v1355 = vpack.c.b16 %v1059, %v1055
    %v1356 = vpack.c.b16 %v1064, %v1060
    %v1357 = vpack.c.b16 %v1065, %v1061
    %v1358 = vpack.c.b16 %v1066, %v1062
    %v1359 = vpack.c.b16 %v1067, %v1063
    %v1360 = vpack.c.b16 %v1072, %v1068
    %v1361 = vpack.c.b16 %v1073, %v1069
    %v1362 = vpack.c.b16 %v1074, %v1070
    %v1363 = vpack.c.b16 %v1075, %v1071
    %v1364 = vpack.c.b16 %v1080, %v1076
    %v1365 = vpack.c.b16 %v1081, %v1077
    %v1366 = vpack.c.b16 %v1082, %v1078
    %v1367 = vpack.c.b16 %v1083, %v1079
    %v1368 = vpack.c.b16 %v1088, %v1084
    %v1369 = vpack.c.b16 %v1089, %v1085
    %v1370 = vpack.c.b16 %v1090, %v1086
    %v1371 = vpack.c.b16 %v1091, %v1087
    %v1372 = vpack.c.b16 %v1096, %v1092
    %v1373 = vpack.c.b16 %v1097, %v1093
    %v1374 = vpack.c.b16 %v1098, %v1094
    %v1375 = vpack.c.b16 %v1099, %v1095
    %v1376 = vpack.c.b16 %v1104, %v1100
    %v1377 = vpack.c.b16 %v1105, %v1101
    %v1378 = vpack.c.b16 %v1106, %v1102
    %v1379 = vpack.c.b16 %v1107, %v1103
    %v1380 = vpack.c.b16 %v1112, %v1108
    %v1381 = vpack.c.b16 %v1113, %v1109
    %v1382 = vpack.c.b16 %v1114, %v1110
    %v1383 = vpack.c.b16 %v1115, %v1111
    %v1384 = vpack.c.b16 %v1120, %v1116
    %v1385 = vpack.c.b16 %v1121, %v1117
    %v1386 = vpack.c.b16 %v1122, %v1118
    %v1387 = vpack.c.b16 %v1123, %v1119
    %v1388 = vpack.c.b16 %v1128, %v1124
    %v1389 = vpack.c.b16 %v1129, %v1125
    %v1390 = vpack.c.b16 %v1130, %v1126
    %v1391 = vpack.c.b16 %v1131, %v1127
    %v1392 = vpack.c.b16 %v1136, %v1132
    %v1393 = vpack.c.b16 %v1137, %v1133
    %v1394 = vpack.c.b16 %v1138, %v1134
    %v1395 = vpack.c.b16 %v1139, %v1135
    %1652 = vmatprep.subr.bf16.mxu0 %v1141
    %1653 = vmatpush1.bf16.msra.mxu0 %v1140
    %1654 = vmatprep.subr.bf16.mxu0 %v1145
    %1655 = vmatpush1.bf16.msra.mxu0 %v1144
    %1656 = vmatprep.subr.bf16.mxu0 %v1149
    %1657 = vmatpush1.bf16.msra.mxu0 %v1148
    %1658 = vmatprep.subr.bf16.mxu0 %v1153
    %1659 = vmatpush1.bf16.msra.mxu0 %v1152
    %1660 = vmatprep.subr.bf16.mxu0 %v1157
    %1661 = vmatpush1.bf16.msra.mxu0 %v1156
    %1662 = vmatprep.subr.bf16.mxu0 %v1161
    %1663 = vmatpush1.bf16.msra.mxu0 %v1160
    %1664 = vmatprep.subr.bf16.mxu0 %v1165
    %1665 = vmatpush1.bf16.msra.mxu0 %v1164
    %1666 = vmatprep.subr.bf16.mxu0 %v1169
    %1667 = vmatpush1.bf16.msra.mxu0 %v1168
    %1668 = vmatprep.subr.bf16.mxu0 %v1173
    %1669 = vmatpush1.bf16.msra.mxu0 %v1172
    %1670 = vmatprep.subr.bf16.mxu0 %v1177
    %1671 = vmatpush1.bf16.msra.mxu0 %v1176
    %1672 = vmatprep.subr.bf16.mxu0 %v1181
    %1673 = vmatpush1.bf16.msra.mxu0 %v1180
    %1674 = vmatprep.subr.bf16.mxu0 %v1185
    %1675 = vmatpush1.bf16.msra.mxu0 %v1184
    %1676 = vmatprep.subr.bf16.mxu0 %v1189
    %1677 = vmatpush1.bf16.msra.mxu0 %v1188
    %1678 = vmatprep.subr.bf16.mxu0 %v1193
    %1679 = vmatpush1.bf16.msra.mxu0 %v1192
    %1680 = vmatprep.subr.bf16.mxu0 %v1197
    %1681 = vmatpush1.bf16.msra.mxu0 %v1196
    %1682 = vmatprep.subr.bf16.mxu0 %v1201
    %1683 = vmatpush1.bf16.msra.mxu0 %v1200
    %1684 = vmatprep.mubr.bf16.mxu0 %v87
    %1685 = vmatmul.mubr.bf16.gmra.mrb[0].mxu0 %v86
    %v1686 = vpop.f32.mrb[0].mxu0
    %v1687 = vadd.f32 %v355, %v1686
    %v1688 = vpop.f32.mrb[0].mxu0
    %v1689 = vadd.f32 %v359, %v1688
    %v1690 = vpop.f32.mrb[0].mxu0
    %v1691 = vpop.f32.mrb[0].mxu0
    %1692 = vdwg.mxu0
    %1693 = vmatprep.subr.bf16.mxu0 %v1205
    %1694 = vmatpush1.bf16.msra.mxu0 %v1204
    %1695 = vmatprep.subr.bf16.mxu0 %v1209
    %1696 = vmatpush1.bf16.msra.mxu0 %v1208
    %1697 = vmatprep.subr.bf16.mxu0 %v1213
    %1698 = vmatpush1.bf16.msra.mxu0 %v1212
    %1699 = vmatprep.subr.bf16.mxu0 %v1217
    %1700 = vmatpush1.bf16.msra.mxu0 %v1216
    %1701 = vmatprep.subr.bf16.mxu0 %v1221
    %1702 = vmatpush1.bf16.msra.mxu0 %v1220
    %1703 = vmatprep.subr.bf16.mxu0 %v1225
    %1704 = vmatpush1.bf16.msra.mxu0 %v1224
    %1705 = vmatprep.subr.bf16.mxu0 %v1229
    %1706 = vmatpush1.bf16.msra.mxu0 %v1228
    %1707 = vmatprep.subr.bf16.mxu0 %v1233
    %1708 = vmatpush1.bf16.msra.mxu0 %v1232
    %1709 = vmatprep.subr.bf16.mxu0 %v1237
    %1710 = vmatpush1.bf16.msra.mxu0 %v1236
    %1711 = vmatprep.subr.bf16.mxu0 %v1241
    %1712 = vmatpush1.bf16.msra.mxu0 %v1240
    %1713 = vmatprep.subr.bf16.mxu0 %v1245
    %1714 = vmatpush1.bf16.msra.mxu0 %v1244
    %1715 = vmatprep.subr.bf16.mxu0 %v1249
    %1716 = vmatpush1.bf16.msra.mxu0 %v1248
    %1717 = vmatprep.subr.bf16.mxu0 %v1253
    %1718 = vmatpush1.bf16.msra.mxu0 %v1252
    %1719 = vmatprep.subr.bf16.mxu0 %v1257
    %1720 = vmatpush1.bf16.msra.mxu0 %v1256
    %1721 = vmatprep.subr.bf16.mxu0 %v1261
    %1722 = vmatpush1.bf16.msra.mxu0 %v1260
    %1723 = vmatprep.subr.bf16.mxu0 %v1265
    %1724 = vmatpush1.bf16.msra.mxu0 %v1264
    %1725 = vmatprep.mubr.bf16.mxu0 %v89
    %1726 = vmatmul.mubr.bf16.gmra.mrb[0].mxu0 %v88
    %v1727 = vpop.f32.mrb[0].mxu0
    %v1728 = vadd.f32 %v1687, %v1727
    %v1729 = vpop.f32.mrb[0].mxu0
    %v1730 = vadd.f32 %v1689, %v1729
    %v1731 = vpop.f32.mrb[0].mxu0
    %v1732 = vpop.f32.mrb[0].mxu0
    %1733 = vdwg.mxu0
    %1734 = vmatprep.subr.bf16.mxu0 %v1269
    %1735 = vmatpush1.bf16.msra.mxu0 %v1268
    %1736 = vmatprep.subr.bf16.mxu0 %v1273
    %1737 = vmatpush1.bf16.msra.mxu0 %v1272
    %1738 = vmatprep.subr.bf16.mxu0 %v1277
    %1739 = vmatpush1.bf16.msra.mxu0 %v1276
    %1740 = vmatprep.subr.bf16.mxu0 %v1281
    %1741 = vmatpush1.bf16.msra.mxu0 %v1280
    %1742 = vmatprep.subr.bf16.mxu0 %v1285
    %1743 = vmatpush1.bf16.msra.mxu0 %v1284
    %1744 = vmatprep.subr.bf16.mxu0 %v1289
    %1745 = vmatpush1.bf16.msra.mxu0 %v1288
    %1746 = vmatprep.subr.bf16.mxu0 %v1293
    %1747 = vmatpush1.bf16.msra.mxu0 %v1292
    %1748 = vmatprep.subr.bf16.mxu0 %v1297
    %1749 = vmatpush1.bf16.msra.mxu0 %v1296
    %1750 = vmatprep.subr.bf16.mxu0 %v1301
    %1751 = vmatpush1.bf16.msra.mxu0 %v1300
    %1752 = vmatprep.subr.bf16.mxu0 %v1305
    %1753 = vmatpush1.bf16.msra.mxu0 %v1304
    %1754 = vmatprep.subr.bf16.mxu0 %v1309
    %1755 = vmatpush1.bf16.msra.mxu0 %v1308
    %1756 = vmatprep.subr.bf16.mxu0 %v1313
    %1757 = vmatpush1.bf16.msra.mxu0 %v1312
    %1758 = vmatprep.subr.bf16.mxu0 %v1317
    %1759 = vmatpush1.bf16.msra.mxu0 %v1316
    %1760 = vmatprep.subr.bf16.mxu0 %v1321
    %1761 = vmatpush1.bf16.msra.mxu0 %v1320
    %1762 = vmatprep.subr.bf16.mxu0 %v1325
    %1763 = vmatpush1.bf16.msra.mxu0 %v1324
    %1764 = vmatprep.subr.bf16.mxu0 %v1329
    %1765 = vmatpush1.bf16.msra.mxu0 %v1328
    %1766 = vmatprep.mubr.bf16.mxu0 %v91
    %1767 = vmatmul.mubr.bf16.gmra.mrb[0].mxu0 %v90
    %v1768 = vpop.f32.mrb[0].mxu0
    %v1769 = vadd.f32 %v1728, %v1768
    %v1770 = vpop.f32.mrb[0].mxu0
    %v1771 = vadd.f32 %v1730, %v1770
    %v1772 = vpop.f32.mrb[0].mxu0
    %v1773 = vpop.f32.mrb[0].mxu0
    %1774 = vdwg.mxu0
    %1775 = vmatprep.subr.bf16.mxu0 %v1333
    %1776 = vmatpush1.bf16.msra.mxu0 %v1332
    %1777 = vmatprep.subr.bf16.mxu0 %v1337
    %1778 = vmatpush1.bf16.msra.mxu0 %v1336
    %1779 = vmatprep.subr.bf16.mxu0 %v1341
    %1780 = vmatpush1.bf16.msra.mxu0 %v1340
    %1781 = vmatprep.subr.bf16.mxu0 %v1345
    %1782 = vmatpush1.bf16.msra.mxu0 %v1344
    %1783 = vmatprep.subr.bf16.mxu0 %v1349
    %1784 = vmatpush1.bf16.msra.mxu0 %v1348
    %1785 = vmatprep.subr.bf16.mxu0 %v1353
    %1786 = vmatpush1.bf16.msra.mxu0 %v1352
    %1787 = vmatprep.subr.bf16.mxu0 %v1357
    %1788 = vmatpush1.bf16.msra.mxu0 %v1356
    %1789 = vmatprep.subr.bf16.mxu0 %v1361
    %1790 = vmatpush1.bf16.msra.mxu0 %v1360
    %1791 = vmatprep.subr.bf16.mxu0 %v1365
    %1792 = vmatpush1.bf16.msra.mxu0 %v1364
    %1793 = vmatprep.subr.bf16.mxu0 %v1369
    %1794 = vmatpush1.bf16.msra.mxu0 %v1368
    %1795 = vmatprep.subr.bf16.mxu0 %v1373
    %1796 = vmatpush1.bf16.msra.mxu0 %v1372
    %1797 = vmatprep.subr.bf16.mxu0 %v1377
    %1798 = vmatpush1.bf16.msra.mxu0 %v1376
    %1799 = vmatprep.subr.bf16.mxu0 %v1381
    %1800 = vmatpush1.bf16.msra.mxu0 %v1380
    %1801 = vmatprep.subr.bf16.mxu0 %v1385
    %1802 = vmatpush1.bf16.msra.mxu0 %v1384
    %1803 = vmatprep.subr.bf16.mxu0 %v1389
    %1804 = vmatpush1.bf16.msra.mxu0 %v1388
    %1805 = vmatprep.subr.bf16.mxu0 %v1393
    %1806 = vmatpush1.bf16.msra.mxu0 %v1392
    %1807 = vmatprep.mubr.bf16.mxu0 %v93
    %1808 = vmatmul.mubr.bf16.gmra.mrb[0].mxu0 %v92
    %v1809 = vpop.f32.mrb[0].mxu0
    %v1810 = vadd.f32 %v1769, %v1809
    %v1811 = vpop.f32.mrb[0].mxu0
    %v1812 = vadd.f32 %v1771, %v1811
    %v1813 = vpop.f32.mrb[0].mxu0
    %v1814 = vpop.f32.mrb[0].mxu0
    %1815 = vdwg.mxu0
    %1816 = vmatprep.subr.bf16.mxu0 %v1143
    %1817 = vmatpush1.bf16.msra.mxu0 %v1142
    %1818 = vmatprep.subr.bf16.mxu0 %v1147
    %1819 = vmatpush1.bf16.msra.mxu0 %v1146
    %1820 = vmatprep.subr.bf16.mxu0 %v1151
    %1821 = vmatpush1.bf16.msra.mxu0 %v1150
    %1822 = vmatprep.subr.bf16.mxu0 %v1155
    %1823 = vmatpush1.bf16.msra.mxu0 %v1154
    %1824 = vmatprep.subr.bf16.mxu0 %v1159
    %1825 = vmatpush1.bf16.msra.mxu0 %v1158
    %1826 = vmatprep.subr.bf16.mxu0 %v1163
    %1827 = vmatpush1.bf16.msra.mxu0 %v1162
    %1828 = vmatprep.subr.bf16.mxu0 %v1167
    %1829 = vmatpush1.bf16.msra.mxu0 %v1166
    %1830 = vmatprep.subr.bf16.mxu0 %v1171
    %1831 = vmatpush1.bf16.msra.mxu0 %v1170
    %1832 = vmatprep.subr.bf16.mxu0 %v1175
    %1833 = vmatpush1.bf16.msra.mxu0 %v1174
    %1834 = vmatprep.subr.bf16.mxu0 %v1179
    %1835 = vmatpush1.bf16.msra.mxu0 %v1178
    %1836 = vmatprep.subr.bf16.mxu0 %v1183
    %1837 = vmatpush1.bf16.msra.mxu0 %v1182
    %1838 = vmatprep.subr.bf16.mxu0 %v1187
    %1839 = vmatpush1.bf16.msra.mxu0 %v1186
    %1840 = vmatprep.subr.bf16.mxu0 %v1191
    %1841 = vmatpush1.bf16.msra.mxu0 %v1190
    %1842 = vmatprep.subr.bf16.mxu0 %v1195
    %1843 = vmatpush1.bf16.msra.mxu0 %v1194
    %1844 = vmatprep.subr.bf16.mxu0 %v1199
    %1845 = vmatpush1.bf16.msra.mxu0 %v1198
    %1846 = vmatprep.subr.bf16.mxu0 %v1203
    %1847 = vmatpush1.bf16.msra.mxu0 %v1202
    %1848 = vmatprep.mubr.bf16.mxu0 %v87
    %1849 = vmatmul.mubr.bf16.gmra.mrb[0].mxu0 %v86
    %v1850 = vpop.f32.mrb[0].mxu0
    %v1851 = vadd.f32 %v363, %v1850
    %v1852 = vpop.f32.mrb[0].mxu0
    %v1853 = vadd.f32 %v367, %v1852
    %v1854 = vpop.f32.mrb[0].mxu0
    %v1855 = vpop.f32.mrb[0].mxu0
    %1856 = vdwg.mxu0
    %1857 = vmatprep.subr.bf16.mxu0 %v1207
    %1858 = vmatpush1.bf16.msra.mxu0 %v1206
    %1859 = vmatprep.subr.bf16.mxu0 %v1211
    %1860 = vmatpush1.bf16.msra.mxu0 %v1210
    %1861 = vmatprep.subr.bf16.mxu0 %v1215
    %1862 = vmatpush1.bf16.msra.mxu0 %v1214
    %1863 = vmatprep.subr.bf16.mxu0 %v1219
    %1864 = vmatpush1.bf16.msra.mxu0 %v1218
    %1865 = vmatprep.subr.bf16.mxu0 %v1223
    %1866 = vmatpush1.bf16.msra.mxu0 %v1222
    %1867 = vmatprep.subr.bf16.mxu0 %v1227
    %1868 = vmatpush1.bf16.msra.mxu0 %v1226
    %1869 = vmatprep.subr.bf16.mxu0 %v1231
    %1870 = vmatpush1.bf16.msra.mxu0 %v1230
    %1871 = vmatprep.subr.bf16.mxu0 %v1235
    %1872 = vmatpush1.bf16.msra.mxu0 %v1234
    %1873 = vmatprep.subr.bf16.mxu0 %v1239
    %1874 = vmatpush1.bf16.msra.mxu0 %v1238
    %1875 = vmatprep.subr.bf16.mxu0 %v1243
    %1876 = vmatpush1.bf16.msra.mxu0 %v1242
    %1877 = vmatprep.subr.bf16.mxu0 %v1247
    %1878 = vmatpush1.bf16.msra.mxu0 %v1246
    %1879 = vmatprep.subr.bf16.mxu0 %v1251
    %1880 = vmatpush1.bf16.msra.mxu0 %v1250
    %1881 = vmatprep.subr.bf16.mxu0 %v1255
    %1882 = vmatpush1.bf16.msra.mxu0 %v1254
    %1883 = vmatprep.subr.bf16.mxu0 %v1259
    %1884 = vmatpush1.bf16.msra.mxu0 %v1258
    %1885 = vmatprep.subr.bf16.mxu0 %v1263
    %1886 = vmatpush1.bf16.msra.mxu0 %v1262
    %1887 = vmatprep.subr.bf16.mxu0 %v1267
    %1888 = vmatpush1.bf16.msra.mxu0 %v1266
    %1889 = vmatprep.mubr.bf16.mxu0 %v89
    %1890 = vmatmul.mubr.bf16.gmra.mrb[0].mxu0 %v88
    %v1891 = vpop.f32.mrb[0].mxu0
    %v1892 = vadd.f32 %v1851, %v1891
    %v1893 = vpop.f32.mrb[0].mxu0
    %v1894 = vadd.f32 %v1853, %v1893
    %v1895 = vpop.f32.mrb[0].mxu0
    %v1896 = vpop.f32.mrb[0].mxu0
    %1897 = vdwg.mxu0
    %1898 = vmatprep.subr.bf16.mxu0 %v1271
    %1899 = vmatpush1.bf16.msra.mxu0 %v1270
    %1900 = vmatprep.subr.bf16.mxu0 %v1275
    %1901 = vmatpush1.bf16.msra.mxu0 %v1274
    %1902 = vmatprep.subr.bf16.mxu0 %v1279
    %1903 = vmatpush1.bf16.msra.mxu0 %v1278
    %1904 = vmatprep.subr.bf16.mxu0 %v1283
    %1905 = vmatpush1.bf16.msra.mxu0 %v1282
    %1906 = vmatprep.subr.bf16.mxu0 %v1287
    %1907 = vmatpush1.bf16.msra.mxu0 %v1286
    %1908 = vmatprep.subr.bf16.mxu0 %v1291
    %1909 = vmatpush1.bf16.msra.mxu0 %v1290
    %1910 = vmatprep.subr.bf16.mxu0 %v1295
    %1911 = vmatpush1.bf16.msra.mxu0 %v1294
    %1912 = vmatprep.subr.bf16.mxu0 %v1299
    %1913 = vmatpush1.bf16.msra.mxu0 %v1298
    %1914 = vmatprep.subr.bf16.mxu0 %v1303
    %1915 = vmatpush1.bf16.msra.mxu0 %v1302
    %1916 = vmatprep.subr.bf16.mxu0 %v1307
    %1917 = vmatpush1.bf16.msra.mxu0 %v1306
    %1918 = vmatprep.subr.bf16.mxu0 %v1311
    %1919 = vmatpush1.bf16.msra.mxu0 %v1310
    %1920 = vmatprep.subr.bf16.mxu0 %v1315
    %1921 = vmatpush1.bf16.msra.mxu0 %v1314
    %1922 = vmatprep.subr.bf16.mxu0 %v1319
    %1923 = vmatpush1.bf16.msra.mxu0 %v1318
    %1924 = vmatprep.subr.bf16.mxu0 %v1323
    %1925 = vmatpush1.bf16.msra.mxu0 %v1322
    %1926 = vmatprep.subr.bf16.mxu0 %v1327
    %1927 = vmatpush1.bf16.msra.mxu0 %v1326
    %1928 = vmatprep.subr.bf16.mxu0 %v1331
    %1929 = vmatpush1.bf16.msra.mxu0 %v1330
    %1930 = vmatprep.mubr.bf16.mxu0 %v91
    %1931 = vmatmul.mubr.bf16.gmra.mrb[0].mxu0 %v90
    %v1932 = vpop.f32.mrb[0].mxu0
    %v1933 = vadd.f32 %v1892, %v1932
    %v1934 = vpop.f32.mrb[0].mxu0
    %v1935 = vadd.f32 %v1894, %v1934
    %v1936 = vpop.f32.mrb[0].mxu0
    %v1937 = vpop.f32.mrb[0].mxu0
    %1938 = vdwg.mxu0
    %1939 = vmatprep.subr.bf16.mxu0 %v1335
    %1940 = vmatpush1.bf16.msra.mxu0 %v1334
    %1941 = vmatprep.subr.bf16.mxu0 %v1339
    %1942 = vmatpush1.bf16.msra.mxu0 %v1338
    %1943 = vmatprep.subr.bf16.mxu0 %v1343
    %1944 = vmatpush1.bf16.msra.mxu0 %v1342
    %1945 = vmatprep.subr.bf16.mxu0 %v1347
    %1946 = vmatpush1.bf16.msra.mxu0 %v1346
    %1947 = vmatprep.subr.bf16.mxu0 %v1351
    %1948 = vmatpush1.bf16.msra.mxu0 %v1350
    %1949 = vmatprep.subr.bf16.mxu0 %v1355
    %1950 = vmatpush1.bf16.msra.mxu0 %v1354
    %1951 = vmatprep.subr.bf16.mxu0 %v1359
    %1952 = vmatpush1.bf16.msra.mxu0 %v1358
    %1953 = vmatprep.subr.bf16.mxu0 %v1363
    %1954 = vmatpush1.bf16.msra.mxu0 %v1362
    %1955 = vmatprep.subr.bf16.mxu0 %v1367
    %1956 = vmatpush1.bf16.msra.mxu0 %v1366
    %1957 = vmatprep.subr.bf16.mxu0 %v1371
    %1958 = vmatpush1.bf16.msra.mxu0 %v1370
    %1959 = vmatprep.subr.bf16.mxu0 %v1375
    %1960 = vmatpush1.bf16.msra.mxu0 %v1374
    %1961 = vmatprep.subr.bf16.mxu0 %v1379
    %1962 = vmatpush1.bf16.msra.mxu0 %v1378
    %1963 = vmatprep.subr.bf16.mxu0 %v1383
    %1964 = vmatpush1.bf16.msra.mxu0 %v1382
    %1965 = vmatprep.subr.bf16.mxu0 %v1387
    %1966 = vmatpush1.bf16.msra.mxu0 %v1386
    %1967 = vmatprep.subr.bf16.mxu0 %v1391
    %1968 = vmatpush1.bf16.msra.mxu0 %v1390
    %1969 = vmatprep.subr.bf16.mxu0 %v1395
    %1970 = vmatpush1.bf16.msra.mxu0 %v1394
    %1971 = vmatprep.mubr.bf16.mxu0 %v93
    %1972 = vmatmul.mubr.bf16.gmra.mrb[0].mxu0 %v92
    %v1973 = vpop.f32.mrb[0].mxu0
    %v1974 = vadd.f32 %v1933, %v1973
    %v1975 = vpop.f32.mrb[0].mxu0
    %v1976 = vadd.f32 %v1935, %v1975
    %v1977 = vpop.f32.mrb[0].mxu0
    %v1978 = vpop.f32.mrb[0].mxu0
    %1979 = vdwg.mxu0
    %v1980 = vmax.f32 %v1810, 0.0
    %v1981 = vmax.f32 %v1812, 0.0
    %v1982 = vmax.f32 %v1974, 0.0
    %v1983 = vmax.f32 %v1976, 0.0
    %v1984 = vpack.c.bf16 %v1980, %v1980
    %v1985 = vpack.c.bf16 %v1981, %v1981
    %v1986 = vpack.c.bf16 %v1982, %v1982
    %v1987 = vpack.c.bf16 %v1983, %v1983
    %v1988 = vld [vmem:[%s3] sm:$0xff]
    %v1989 = vld [vmem:[%s3 + $0x8] sm:$0xff]
    %v1990 = vld [vmem:[%s3 + $0x10] sm:$0xff]
    %v1991 = vld [vmem:[%s3 + $0x18] sm:$0xff]
    %v1992 = vld [vmem:[%s3 + $0x20] sm:$0xff]
    %v1993 = vld [vmem:[%s3 + $0x28] sm:$0xff]
    %v1994 = vld [vmem:[%s3 + $0x30] sm:$0xff]
    %v1995 = vld [vmem:[%s3 + $0x38] sm:$0xff]
    %v1996 = vld [vmem:[%s3 + $0x40] sm:$0xff]
    %v1997 = vld [vmem:[%s3 + $0x48] sm:$0xff]
    %v1998 = vld [vmem:[%s3 + $0x50] sm:$0xff]
    %v1999 = vld [vmem:[%s3 + $0x58] sm:$0xff]
    %v2000 = vld [vmem:[%s3 + $0x60] sm:$0xff]
    %v2001 = vld [vmem:[%s3 + $0x68] sm:$0xff]
    %v2002 = vld [vmem:[%s3 + $0x70] sm:$0xff]
    %v2003 = vld [vmem:[%s3 + $0x78] sm:$0xff]
    %v2004 = vld [vmem:[%s3 + $0x80] sm:$0xff]
    %v2005 = vld [vmem:[%s3 + $0x88] sm:$0xff]
    %v2006 = vld [vmem:[%s3 + $0x90] sm:$0xff]
    %v2007 = vld [vmem:[%s3 + $0x98] sm:$0xff]
    %v2008 = vld [vmem:[%s3 + $0xa0] sm:$0xff]
    %v2009 = vld [vmem:[%s3 + $0xa8] sm:$0xff]
    %v2010 = vld [vmem:[%s3 + $0xb0] sm:$0xff]
    %v2011 = vld [vmem:[%s3 + $0xb8] sm:$0xff]
    %v2012 = vld [vmem:[%s3 + $0xc0] sm:$0xff]
    %v2013 = vld [vmem:[%s3 + $0xc8] sm:$0xff]
    %v2014 = vld [vmem:[%s3 + $0xd0] sm:$0xff]
    %v2015 = vld [vmem:[%s3 + $0xd8] sm:$0xff]
    %v2016 = vld [vmem:[%s3 + $0xe0] sm:$0xff]
    %v2017 = vld [vmem:[%s3 + $0xe8] sm:$0xff]
    %v2018 = vld [vmem:[%s3 + $0xf0] sm:$0xff]
    %v2019 = vld [vmem:[%s3 + $0xf8] sm:$0xff]
    %v2020 = vld [vmem:[%s3 + $0x100] sm:$0xff]
    %v2021 = vld [vmem:[%s3 + $0x108] sm:$0xff]
    %v2022 = vld [vmem:[%s3 + $0x110] sm:$0xff]
    %v2023 = vld [vmem:[%s3 + $0x118] sm:$0xff]
    %v2024 = vld [vmem:[%s3 + $0x120] sm:$0xff]
    %v2025 = vld [vmem:[%s3 + $0x128] sm:$0xff]
    %v2026 = vld [vmem:[%s3 + $0x130] sm:$0xff]
    %v2027 = vld [vmem:[%s3 + $0x138] sm:$0xff]
    %v2028 = vld [vmem:[%s3 + $0x140] sm:$0xff]
    %v2029 = vld [vmem:[%s3 + $0x148] sm:$0xff]
    %v2030 = vld [vmem:[%s3 + $0x150] sm:$0xff]
    %v2031 = vld [vmem:[%s3 + $0x158] sm:$0xff]
    %v2032 = vld [vmem:[%s3 + $0x160] sm:$0xff]
    %v2033 = vld [vmem:[%s3 + $0x168] sm:$0xff]
    %v2034 = vld [vmem:[%s3 + $0x170] sm:$0xff]
    %v2035 = vld [vmem:[%s3 + $0x178] sm:$0xff]
    %v2036 = vld [vmem:[%s3 + $0x180] sm:$0xff]
    %v2037 = vld [vmem:[%s3 + $0x188] sm:$0xff]
    %v2038 = vld [vmem:[%s3 + $0x190] sm:$0xff]
    %v2039 = vld [vmem:[%s3 + $0x198] sm:$0xff]
    %v2040 = vld [vmem:[%s3 + $0x1a0] sm:$0xff]
    %v2041 = vld [vmem:[%s3 + $0x1a8] sm:$0xff]
    %v2042 = vld [vmem:[%s3 + $0x1b0] sm:$0xff]
    %v2043 = vld [vmem:[%s3 + $0x1b8] sm:$0xff]
    %v2044 = vld [vmem:[%s3 + $0x1c0] sm:$0xff]
    %v2045 = vld [vmem:[%s3 + $0x1c8] sm:$0xff]
    %v2046 = vld [vmem:[%s3 + $0x1d0] sm:$0xff]
    %v2047 = vld [vmem:[%s3 + $0x1d8] sm:$0xff]
    %v2048 = vld [vmem:[%s3 + $0x1e0] sm:$0xff]
    %v2049 = vld [vmem:[%s3 + $0x1e8] sm:$0xff]
    %v2050 = vld [vmem:[%s3 + $0x1f0] sm:$0xff]
    %v2051 = vld [vmem:[%s3 + $0x1f8] sm:$0xff]
    %v2052 = vld [vmem:[%s3 + $0x200] sm:$0xff]
    %v2053 = vld [vmem:[%s3 + $0x208] sm:$0xff]
    %v2054 = vld [vmem:[%s3 + $0x210] sm:$0xff]
    %v2055 = vld [vmem:[%s3 + $0x218] sm:$0xff]
    %v2056 = vld [vmem:[%s3 + $0x220] sm:$0xff]
    %v2057 = vld [vmem:[%s3 + $0x228] sm:$0xff]
    %v2058 = vld [vmem:[%s3 + $0x230] sm:$0xff]
    %v2059 = vld [vmem:[%s3 + $0x238] sm:$0xff]
    %v2060 = vld [vmem:[%s3 + $0x240] sm:$0xff]
    %v2061 = vld [vmem:[%s3 + $0x248] sm:$0xff]
    %v2062 = vld [vmem:[%s3 + $0x250] sm:$0xff]
    %v2063 = vld [vmem:[%s3 + $0x258] sm:$0xff]
    %v2064 = vld [vmem:[%s3 + $0x260] sm:$0xff]
    %v2065 = vld [vmem:[%s3 + $0x268] sm:$0xff]
    %v2066 = vld [vmem:[%s3 + $0x270] sm:$0xff]
    %v2067 = vld [vmem:[%s3 + $0x278] sm:$0xff]
    %v2068 = vld [vmem:[%s3 + $0x280] sm:$0xff]
    %v2069 = vld [vmem:[%s3 + $0x288] sm:$0xff]
    %v2070 = vld [vmem:[%s3 + $0x290] sm:$0xff]
    %v2071 = vld [vmem:[%s3 + $0x298] sm:$0xff]
    %v2072 = vld [vmem:[%s3 + $0x2a0] sm:$0xff]
    %v2073 = vld [vmem:[%s3 + $0x2a8] sm:$0xff]
    %v2074 = vld [vmem:[%s3 + $0x2b0] sm:$0xff]
    %v2075 = vld [vmem:[%s3 + $0x2b8] sm:$0xff]
    %v2076 = vld [vmem:[%s3 + $0x2c0] sm:$0xff]
    %v2077 = vld [vmem:[%s3 + $0x2c8] sm:$0xff]
    %v2078 = vld [vmem:[%s3 + $0x2d0] sm:$0xff]
    %v2079 = vld [vmem:[%s3 + $0x2d8] sm:$0xff]
    %v2080 = vld [vmem:[%s3 + $0x2e0] sm:$0xff]
    %v2081 = vld [vmem:[%s3 + $0x2e8] sm:$0xff]
    %v2082 = vld [vmem:[%s3 + $0x2f0] sm:$0xff]
    %v2083 = vld [vmem:[%s3 + $0x2f8] sm:$0xff]
    %v2084 = vld [vmem:[%s3 + $0x300] sm:$0xff]
    %v2085 = vld [vmem:[%s3 + $0x308] sm:$0xff]
    %v2086 = vld [vmem:[%s4] sm:$0xf]
    %v2088 = vlaneseq
    %v2089 = vshrl.u32 %v2088, 7
    %v2090 = vsub.s32 0, %v2089
    %v2091 = vrot.slane %v2086, %v2090
    %v2092 = vlaneseq
    %v2093 = vshrl.u32 %v2092, 7
    %v2094 = vsub.s32 1, %v2093
    %v2095 = vrot.slane %v2086, %v2094
    %v2096 = vlaneseq
    %v2097 = vshrl.u32 %v2096, 7
    %v2098 = vsub.s32 2, %v2097
    %v2099 = vrot.slane %v2086, %v2098
    %v2100 = vlaneseq
    %v2101 = vshrl.u32 %v2100, 7
    %v2102 = vsub.s32 3, %v2101
    %v2103 = vrot.slane %v2086, %v2102
    %v2206 = vunpack.c.l.b16 %v1988
    %v2207 = vunpack.c.h.b16 %v1988
    %v2208 = vunpack.c.l.b16 %v1989
    %v2209 = vunpack.c.h.b16 %v1989
    %v2210 = vunpack.c.l.b16 %v1990
    %v2211 = vunpack.c.h.b16 %v1990
    %v2212 = vunpack.c.l.b16 %v1991
    %v2213 = vunpack.c.h.b16 %v1991
    %v2214 = vunpack.c.l.b16 %v1992
    %v2215 = vunpack.c.h.b16 %v1992
    %v2216 = vunpack.c.l.b16 %v1993
    %v2217 = vunpack.c.h.b16 %v1993
    %v2218 = vunpack.c.l.b16 %v1994
    %v2219 = vunpack.c.h.b16 %v1994
    %v2220 = vunpack.c.l.b16 %v1995
    %v2221 = vunpack.c.h.b16 %v1995
    %v2222 = vunpack.c.l.b16 %v1996
    %v2223 = vunpack.c.h.b16 %v1996
    %v2224 = vunpack.c.l.b16 %v1997
    %v2225 = vunpack.c.h.b16 %v1997
    %v2226 = vunpack.c.l.b16 %v1998
    %v2227 = vunpack.c.h.b16 %v1998
    %v2228 = vunpack.c.l.b16 %v1999
    %v2229 = vunpack.c.h.b16 %v1999
    %v2230 = vunpack.c.l.b16 %v2000
    %v2231 = vunpack.c.h.b16 %v2000
    %v2232 = vunpack.c.l.b16 %v2001
    %v2233 = vunpack.c.h.b16 %v2001
    %v2234 = vunpack.c.l.b16 %v2002
    %v2235 = vunpack.c.h.b16 %v2002
    %v2236 = vunpack.c.l.b16 %v2003
    %v2237 = vunpack.c.h.b16 %v2003
    %v2238 = vunpack.c.l.b16 %v2004
    %v2239 = vunpack.c.h.b16 %v2004
    %v2240 = vunpack.c.l.b16 %v2005
    %v2241 = vunpack.c.h.b16 %v2005
    %v2242 = vunpack.c.l.b16 %v2006
    %v2243 = vunpack.c.h.b16 %v2006
    %v2244 = vunpack.c.l.b16 %v2007
    %v2245 = vunpack.c.h.b16 %v2007
    %v2246 = vunpack.c.l.b16 %v2008
    %v2247 = vunpack.c.h.b16 %v2008
    %v2248 = vunpack.c.l.b16 %v2009
    %v2249 = vunpack.c.h.b16 %v2009
    %v2250 = vunpack.c.l.b16 %v2010
    %v2251 = vunpack.c.h.b16 %v2010
    %v2252 = vunpack.c.l.b16 %v2011
    %v2253 = vunpack.c.h.b16 %v2011
    %v2254 = vunpack.c.l.b16 %v2012
    %v2255 = vunpack.c.h.b16 %v2012
    %v2256 = vunpack.c.l.b16 %v2013
    %v2257 = vunpack.c.h.b16 %v2013
    %v2258 = vunpack.c.l.b16 %v2014
    %v2259 = vunpack.c.h.b16 %v2014
    %v2260 = vunpack.c.l.b16 %v2015
    %v2261 = vunpack.c.h.b16 %v2015
    %v2262 = vunpack.c.l.b16 %v2016
    %v2263 = vunpack.c.h.b16 %v2016
    %v2264 = vunpack.c.l.b16 %v2017
    %v2265 = vunpack.c.h.b16 %v2017
    %v2266 = vunpack.c.l.b16 %v2018
    %v2267 = vunpack.c.h.b16 %v2018
    %v2268 = vunpack.c.l.b16 %v2019
    %v2269 = vunpack.c.h.b16 %v2019
    %v2270 = vunpack.c.l.b16 %v2020
    %v2271 = vunpack.c.h.b16 %v2020
    %v2272 = vunpack.c.l.b16 %v2021
    %v2273 = vunpack.c.h.b16 %v2021
    %v2274 = vunpack.c.l.b16 %v2022
    %v2275 = vunpack.c.h.b16 %v2022
    %v2276 = vunpack.c.l.b16 %v2023
    %v2277 = vunpack.c.h.b16 %v2023
    %v2278 = vunpack.c.l.b16 %v2024
    %v2279 = vunpack.c.h.b16 %v2024
    %v2280 = vunpack.c.l.b16 %v2025
    %v2281 = vunpack.c.h.b16 %v2025
    %v2282 = vunpack.c.l.b16 %v2026
    %v2283 = vunpack.c.h.b16 %v2026
    %v2284 = vunpack.c.l.b16 %v2027
    %v2285 = vunpack.c.h.b16 %v2027
    %v2286 = vunpack.c.l.b16 %v2028
    %v2287 = vunpack.c.h.b16 %v2028
    %v2288 = vunpack.c.l.b16 %v2029
    %v2289 = vunpack.c.h.b16 %v2029
    %v2290 = vunpack.c.l.b16 %v2030
    %v2291 = vunpack.c.h.b16 %v2030
    %v2292 = vunpack.c.l.b16 %v2031
    %v2293 = vunpack.c.h.b16 %v2031
    %v2294 = vunpack.c.l.b16 %v2032
    %v2295 = vunpack.c.h.b16 %v2032
    %v2296 = vunpack.c.l.b16 %v2033
    %v2297 = vunpack.c.h.b16 %v2033
    %v2298 = vunpack.c.l.b16 %v2034
    %v2299 = vunpack.c.h.b16 %v2034
    %v2300 = vunpack.c.l.b16 %v2035
    %v2301 = vunpack.c.h.b16 %v2035
    %v2302 = vunpack.c.l.b16 %v2036
    %v2303 = vunpack.c.h.b16 %v2036
    %v2304 = vunpack.c.l.b16 %v2037
    %v2305 = vunpack.c.h.b16 %v2037
    %v2306 = vunpack.c.l.b16 %v2038
    %v2307 = vunpack.c.h.b16 %v2038
    %v2308 = vunpack.c.l.b16 %v2039
    %v2309 = vunpack.c.h.b16 %v2039
    %v2310 = vunpack.c.l.b16 %v2040
    %v2311 = vunpack.c.h.b16 %v2040
    %v2312 = vunpack.c.l.b16 %v2041
    %v2313 = vunpack.c.h.b16 %v2041
    %v2314 = vunpack.c.l.b16 %v2042
    %v2315 = vunpack.c.h.b16 %v2042
    %v2316 = vunpack.c.l.b16 %v2043
    %v2317 = vunpack.c.h.b16 %v2043
    %v2318 = vunpack.c.l.b16 %v2044
    %v2319 = vunpack.c.h.b16 %v2044
    %v2320 = vunpack.c.l.b16 %v2045
    %v2321 = vunpack.c.h.b16 %v2045
    %v2322 = vunpack.c.l.b16 %v2046
    %v2323 = vunpack.c.h.b16 %v2046
    %v2324 = vunpack.c.l.b16 %v2047
    %v2325 = vunpack.c.h.b16 %v2047
    %v2326 = vunpack.c.l.b16 %v2048
    %v2327 = vunpack.c.h.b16 %v2048
    %v2328 = vunpack.c.l.b16 %v2049
    %v2329 = vunpack.c.h.b16 %v2049
    %v2330 = vunpack.c.l.b16 %v2050
    %v2331 = vunpack.c.h.b16 %v2050
    %v2332 = vunpack.c.l.b16 %v2051
    %v2333 = vunpack.c.h.b16 %v2051
    %v2334 = vunpack.c.l.b16 %v2052
    %v2335 = vunpack.c.h.b16 %v2052
    %v2336 = vunpack.c.l.b16 %v2053
    %v2337 = vunpack.c.h.b16 %v2053
    %v2338 = vunpack.c.l.b16 %v2054
    %v2339 = vunpack.c.h.b16 %v2054
    %v2340 = vunpack.c.l.b16 %v2055
    %v2341 = vunpack.c.h.b16 %v2055
    %v2342 = vunpack.c.l.b16 %v2056
    %v2343 = vunpack.c.h.b16 %v2056
    %v2344 = vunpack.c.l.b16 %v2057
    %v2345 = vunpack.c.h.b16 %v2057
    %v2346 = vunpack.c.l.b16 %v2058
    %v2347 = vunpack.c.h.b16 %v2058
    %v2348 = vunpack.c.l.b16 %v2059
    %v2349 = vunpack.c.h.b16 %v2059
    %v2350 = vunpack.c.l.b16 %v2060
    %v2351 = vunpack.c.h.b16 %v2060
    %v2352 = vunpack.c.l.b16 %v2061
    %v2353 = vunpack.c.h.b16 %v2061
    %v2354 = vunpack.c.l.b16 %v2062
    %v2355 = vunpack.c.h.b16 %v2062
    %v2356 = vunpack.c.l.b16 %v2063
    %v2357 = vunpack.c.h.b16 %v2063
    %v2358 = vunpack.c.l.b16 %v2064
    %v2359 = vunpack.c.h.b16 %v2064
    %v2360 = vunpack.c.l.b16 %v2065
    %v2361 = vunpack.c.h.b16 %v2065
    %v2362 = vunpack.c.l.b16 %v2066
    %v2363 = vunpack.c.h.b16 %v2066
    %v2364 = vunpack.c.l.b16 %v2067
    %v2365 = vunpack.c.h.b16 %v2067
    %v2366 = vunpack.c.l.b16 %v2068
    %v2367 = vunpack.c.h.b16 %v2068
    %v2368 = vunpack.c.l.b16 %v2069
    %v2369 = vunpack.c.h.b16 %v2069
    %v2370 = vunpack.c.l.b16 %v2070
    %v2371 = vunpack.c.h.b16 %v2070
    %v2372 = vunpack.c.l.b16 %v2071
    %v2373 = vunpack.c.h.b16 %v2071
    %v2374 = vunpack.c.l.b16 %v2072
    %v2375 = vunpack.c.h.b16 %v2072
    %v2376 = vunpack.c.l.b16 %v2073
    %v2377 = vunpack.c.h.b16 %v2073
    %v2378 = vunpack.c.l.b16 %v2074
    %v2379 = vunpack.c.h.b16 %v2074
    %v2380 = vunpack.c.l.b16 %v2075
    %v2381 = vunpack.c.h.b16 %v2075
    %v2382 = vunpack.c.l.b16 %v2076
    %v2383 = vunpack.c.h.b16 %v2076
    %v2384 = vunpack.c.l.b16 %v2077
    %v2385 = vunpack.c.h.b16 %v2077
    %v2386 = vunpack.c.l.b16 %v2078
    %v2387 = vunpack.c.h.b16 %v2078
    %v2388 = vunpack.c.l.b16 %v2079
    %v2389 = vunpack.c.h.b16 %v2079
    %v2390 = vunpack.c.l.b16 %v2080
    %v2391 = vunpack.c.h.b16 %v2080
    %v2392 = vunpack.c.l.b16 %v2081
    %v2393 = vunpack.c.h.b16 %v2081
    %v2394 = vunpack.c.l.b16 %v2082
    %v2395 = vunpack.c.h.b16 %v2082
    %v2396 = vunpack.c.l.b16 %v2083
    %v2397 = vunpack.c.h.b16 %v2083
    %v2398 = vunpack.c.l.b16 %v2084
    %v2399 = vunpack.c.h.b16 %v2084
    %v2400 = vunpack.c.l.b16 %v2085
    %v2401 = vunpack.c.h.b16 %v2085
    %v2402 = vpack.c.b16 %v2210, %v2206
    %v2403 = vpack.c.b16 %v2211, %v2207
    %v2404 = vpack.c.b16 %v2212, %v2208
    %v2405 = vpack.c.b16 %v2213, %v2209
    %v2406 = vpack.c.b16 %v2218, %v2214
    %v2407 = vpack.c.b16 %v2219, %v2215
    %v2408 = vpack.c.b16 %v2220, %v2216
    %v2409 = vpack.c.b16 %v2221, %v2217
    %v2410 = vpack.c.b16 %v2226, %v2222
    %v2411 = vpack.c.b16 %v2227, %v2223
    %v2412 = vpack.c.b16 %v2228, %v2224
    %v2413 = vpack.c.b16 %v2229, %v2225
    %v2414 = vpack.c.b16 %v2234, %v2230
    %v2415 = vpack.c.b16 %v2235, %v2231
    %v2416 = vpack.c.b16 %v2236, %v2232
    %v2417 = vpack.c.b16 %v2237, %v2233
    %v2418 = vpack.c.b16 %v2242, %v2238
    %v2419 = vpack.c.b16 %v2243, %v2239
    %v2420 = vpack.c.b16 %v2244, %v2240
    %v2421 = vpack.c.b16 %v2245, %v2241
    %v2422 = vpack.c.b16 %v2250, %v2246
    %v2423 = vpack.c.b16 %v2251, %v2247
    %v2424 = vpack.c.b16 %v2252, %v2248
    %v2425 = vpack.c.b16 %v2253, %v2249
    %v2426 = vpack.c.b16 %v2258, %v2254
    %v2427 = vpack.c.b16 %v2259, %v2255
    %v2428 = vpack.c.b16 %v2260, %v2256
    %v2429 = vpack.c.b16 %v2261, %v2257
    %v2430 = vpack.c.b16 %v2266, %v2262
    %v2431 = vpack.c.b16 %v2267, %v2263
    %v2432 = vpack.c.b16 %v2268, %v2264
    %v2433 = vpack.c.b16 %v2269, %v2265
    %v2434 = vpack.c.b16 %v2274, %v2270
    %v2435 = vpack.c.b16 %v2275, %v2271
    %v2436 = vpack.c.b16 %v2276, %v2272
    %v2437 = vpack.c.b16 %v2277, %v2273
    %v2438 = vpack.c.b16 %v2282, %v2278
    %v2439 = vpack.c.b16 %v2283, %v2279
    %v2440 = vpack.c.b16 %v2284, %v2280
    %v2441 = vpack.c.b16 %v2285, %v2281
    %v2442 = vpack.c.b16 %v2290, %v2286
    %v2443 = vpack.c.b16 %v2291, %v2287
    %v2444 = vpack.c.b16 %v2292, %v2288
    %v2445 = vpack.c.b16 %v2293, %v2289
    %v2446 = vpack.c.b16 %v2298, %v2294
    %v2447 = vpack.c.b16 %v2299, %v2295
    %v2448 = vpack.c.b16 %v2300, %v2296
    %v2449 = vpack.c.b16 %v2301, %v2297
    %v2450 = vpack.c.b16 %v2306, %v2302
    %v2451 = vpack.c.b16 %v2307, %v2303
    %v2452 = vpack.c.b16 %v2308, %v2304
    %v2453 = vpack.c.b16 %v2309, %v2305
    %v2454 = vpack.c.b16 %v2314, %v2310
    %v2455 = vpack.c.b16 %v2315, %v2311
    %v2456 = vpack.c.b16 %v2316, %v2312
    %v2457 = vpack.c.b16 %v2317, %v2313
    %v2458 = vpack.c.b16 %v2322, %v2318
    %v2459 = vpack.c.b16 %v2323, %v2319
    %v2460 = vpack.c.b16 %v2324, %v2320
    %v2461 = vpack.c.b16 %v2325, %v2321
    %v2462 = vpack.c.b16 %v2330, %v2326
    %v2463 = vpack.c.b16 %v2331, %v2327
    %v2464 = vpack.c.b16 %v2332, %v2328
    %v2465 = vpack.c.b16 %v2333, %v2329
    %v2466 = vpack.c.b16 %v2338, %v2334
    %v2467 = vpack.c.b16 %v2339, %v2335
    %v2468 = vpack.c.b16 %v2340, %v2336
    %v2469 = vpack.c.b16 %v2341, %v2337
    %v2470 = vpack.c.b16 %v2346, %v2342
    %v2471 = vpack.c.b16 %v2347, %v2343
    %v2472 = vpack.c.b16 %v2348, %v2344
    %v2473 = vpack.c.b16 %v2349, %v2345
    %v2474 = vpack.c.b16 %v2354, %v2350
    %v2475 = vpack.c.b16 %v2355, %v2351
    %v2476 = vpack.c.b16 %v2356, %v2352
    %v2477 = vpack.c.b16 %v2357, %v2353
    %v2478 = vpack.c.b16 %v2362, %v2358
    %v2479 = vpack.c.b16 %v2363, %v2359
    %v2480 = vpack.c.b16 %v2364, %v2360
    %v2481 = vpack.c.b16 %v2365, %v2361
    %v2482 = vpack.c.b16 %v2370, %v2366
    %v2483 = vpack.c.b16 %v2371, %v2367
    %v2484 = vpack.c.b16 %v2372, %v2368
    %v2485 = vpack.c.b16 %v2373, %v2369
    %v2486 = vpack.c.b16 %v2378, %v2374
    %v2487 = vpack.c.b16 %v2379, %v2375
    %v2488 = vpack.c.b16 %v2380, %v2376
    %v2489 = vpack.c.b16 %v2381, %v2377
    %v2490 = vpack.c.b16 %v2386, %v2382
    %v2491 = vpack.c.b16 %v2387, %v2383
    %v2492 = vpack.c.b16 %v2388, %v2384
    %v2493 = vpack.c.b16 %v2389, %v2385
    %v2494 = vpack.c.b16 %v2394, %v2390
    %v2495 = vpack.c.b16 %v2395, %v2391
    %v2496 = vpack.c.b16 %v2396, %v2392
    %v2497 = vpack.c.b16 %v2397, %v2393
    %v2498 = vpack.c.b16 %v2398, %v2398
    %v2499 = vpack.c.b16 %v2399, %v2399
    %v2500 = vpack.c.b16 %v2400, %v2400
    %v2501 = vpack.c.b16 %v2401, %v2401
    %vm2598 = vcmask 64512
    %v2600 = vsel %vm2598, %v1987, 0
    %vm2602 = vcmask 1043456
    %v2604 = vsel %vm2602, %v2498, 0
    %v2607 = vsel %vm2602, %v2499, 0
    %v2610 = vsel %vm2602, %v2500, 0
    %v2613 = vsel %vm2602, %v2501, 0
    %2615 = vmatprep.subr.bf16.mxu0 %v2403
    %2616 = vmatpush1.bf16.msra.mxu0 %v2402
    %2617 = vmatprep.subr.bf16.mxu0 %v2407
    %2618 = vmatpush1.bf16.msra.mxu0 %v2406
    %2619 = vmatprep.subr.bf16.mxu0 %v2411
    %2620 = vmatpush1.bf16.msra.mxu0 %v2410
    %2621 = vmatprep.subr.bf16.mxu0 %v2415
    %2622 = vmatpush1.bf16.msra.mxu0 %v2414
    %2623 = vmatprep.subr.bf16.mxu0 %v2419
    %2624 = vmatpush1.bf16.msra.mxu0 %v2418
    %2625 = vmatprep.subr.bf16.mxu0 %v2423
    %2626 = vmatpush1.bf16.msra.mxu0 %v2422
    %2627 = vmatprep.subr.bf16.mxu0 %v2427
    %2628 = vmatpush1.bf16.msra.mxu0 %v2426
    %2629 = vmatprep.subr.bf16.mxu0 %v2431
    %2630 = vmatpush1.bf16.msra.mxu0 %v2430
    %2631 = vmatprep.subr.bf16.mxu0 %v2435
    %2632 = vmatpush1.bf16.msra.mxu0 %v2434
    %2633 = vmatprep.subr.bf16.mxu0 %v2439
    %2634 = vmatpush1.bf16.msra.mxu0 %v2438
    %2635 = vmatprep.subr.bf16.mxu0 %v2443
    %2636 = vmatpush1.bf16.msra.mxu0 %v2442
    %2637 = vmatprep.subr.bf16.mxu0 %v2447
    %2638 = vmatpush1.bf16.msra.mxu0 %v2446
    %2639 = vmatprep.subr.bf16.mxu0 %v2451
    %2640 = vmatpush1.bf16.msra.mxu0 %v2450
    %2641 = vmatprep.subr.bf16.mxu0 %v2455
    %2642 = vmatpush1.bf16.msra.mxu0 %v2454
    %2643 = vmatprep.subr.bf16.mxu0 %v2459
    %2644 = vmatpush1.bf16.msra.mxu0 %v2458
    %2645 = vmatprep.subr.bf16.mxu0 %v2463
    %2646 = vmatpush1.bf16.msra.mxu0 %v2462
    %2647 = vmatprep.mubr.bf16.mxu0 %v1985
    %2648 = vmatmul.mubr.bf16.gmra.mrb[0].mxu0 %v1984
    %v2649 = vpop.f32.mrb[0].mxu0
    %v2650 = vadd.f32 %v2091, %v2649
    %v2651 = vpop.f32.mrb[0].mxu0
    %v2652 = vadd.f32 %v2095, %v2651
    %v2653 = vpop.f32.mrb[0].mxu0
    %v2654 = vpop.f32.mrb[0].mxu0
    %2655 = vdwg.mxu0
    %2656 = vmatprep.subr.bf16.mxu0 %v2467
    %2657 = vmatpush1.bf16.msra.mxu0 %v2466
    %2658 = vmatprep.subr.bf16.mxu0 %v2471
    %2659 = vmatpush1.bf16.msra.mxu0 %v2470
    %2660 = vmatprep.subr.bf16.mxu0 %v2475
    %2661 = vmatpush1.bf16.msra.mxu0 %v2474
    %2662 = vmatprep.subr.bf16.mxu0 %v2479
    %2663 = vmatpush1.bf16.msra.mxu0 %v2478
    %2664 = vmatprep.subr.bf16.mxu0 %v2483
    %2665 = vmatpush1.bf16.msra.mxu0 %v2482
    %2666 = vmatprep.subr.bf16.mxu0 %v2487
    %2667 = vmatpush1.bf16.msra.mxu0 %v2486
    %2668 = vmatprep.subr.bf16.mxu0 %v2491
    %2669 = vmatpush1.bf16.msra.mxu0 %v2490
    %2670 = vmatprep.subr.bf16.mxu0 %v2495
    %2671 = vmatpush1.bf16.msra.mxu0 %v2494
    %2672 = vmatprep.subr.bf16.mxu0 %v2607
    %2673 = vmatpush1.bf16.msra.mxu0 %v2604
    %2674 = vmatprep.subr.bf16.mxu0 0
    %2675 = vmatpush1.bf16.msra.mxu0 0
    %2676 = vmatprep.subr.bf16.mxu0 0
    %2677 = vmatpush1.bf16.msra.mxu0 0
    %2678 = vmatprep.subr.bf16.mxu0 0
    %2679 = vmatpush1.bf16.msra.mxu0 0
    %2680 = vmatprep.subr.bf16.mxu0 0
    %2681 = vmatpush1.bf16.msra.mxu0 0
    %2682 = vmatprep.subr.bf16.mxu0 0
    %2683 = vmatpush1.bf16.msra.mxu0 0
    %2684 = vmatprep.subr.bf16.mxu0 0
    %2685 = vmatpush1.bf16.msra.mxu0 0
    %2686 = vmatprep.subr.bf16.mxu0 0
    %2687 = vmatpush1.bf16.msra.mxu0 0
    %2688 = vmatprep.mubr.bf16.mxu0 %v2600
    %2689 = vmatmul.mubr.bf16.gmra.mrb[0].mxu0 %v1986
    %v2690 = vpop.f32.mrb[0].mxu0
    %v2691 = vadd.f32 %v2650, %v2690
    %v2692 = vpop.f32.mrb[0].mxu0
    %v2693 = vadd.f32 %v2652, %v2692
    %v2694 = vpop.f32.mrb[0].mxu0
    %v2695 = vpop.f32.mrb[0].mxu0
    %2696 = vdwg.mxu0
    %2697 = vmatprep.subr.bf16.mxu0 %v2405
    %2698 = vmatpush1.bf16.msra.mxu0 %v2404
    %2699 = vmatprep.subr.bf16.mxu0 %v2409
    %2700 = vmatpush1.bf16.msra.mxu0 %v2408
    %2701 = vmatprep.subr.bf16.mxu0 %v2413
    %2702 = vmatpush1.bf16.msra.mxu0 %v2412
    %2703 = vmatprep.subr.bf16.mxu0 %v2417
    %2704 = vmatpush1.bf16.msra.mxu0 %v2416
    %2705 = vmatprep.subr.bf16.mxu0 %v2421
    %2706 = vmatpush1.bf16.msra.mxu0 %v2420
    %2707 = vmatprep.subr.bf16.mxu0 %v2425
    %2708 = vmatpush1.bf16.msra.mxu0 %v2424
    %2709 = vmatprep.subr.bf16.mxu0 %v2429
    %2710 = vmatpush1.bf16.msra.mxu0 %v2428
    %2711 = vmatprep.subr.bf16.mxu0 %v2433
    %2712 = vmatpush1.bf16.msra.mxu0 %v2432
    %2713 = vmatprep.subr.bf16.mxu0 %v2437
    %2714 = vmatpush1.bf16.msra.mxu0 %v2436
    %2715 = vmatprep.subr.bf16.mxu0 %v2441
    %2716 = vmatpush1.bf16.msra.mxu0 %v2440
    %2717 = vmatprep.subr.bf16.mxu0 %v2445
    %2718 = vmatpush1.bf16.msra.mxu0 %v2444
    %2719 = vmatprep.subr.bf16.mxu0 %v2449
    %2720 = vmatpush1.bf16.msra.mxu0 %v2448
    %2721 = vmatprep.subr.bf16.mxu0 %v2453
    %2722 = vmatpush1.bf16.msra.mxu0 %v2452
    %2723 = vmatprep.subr.bf16.mxu0 %v2457
    %2724 = vmatpush1.bf16.msra.mxu0 %v2456
    %2725 = vmatprep.subr.bf16.mxu0 %v2461
    %2726 = vmatpush1.bf16.msra.mxu0 %v2460
    %2727 = vmatprep.subr.bf16.mxu0 %v2465
    %2728 = vmatpush1.bf16.msra.mxu0 %v2464
    %2729 = vmatprep.mubr.bf16.mxu0 %v1985
    %2730 = vmatmul.mubr.bf16.gmra.mrb[0].mxu0 %v1984
    %v2731 = vpop.f32.mrb[0].mxu0
    %v2732 = vadd.f32 %v2099, %v2731
    %v2733 = vpop.f32.mrb[0].mxu0
    %v2734 = vadd.f32 %v2103, %v2733
    %v2735 = vpop.f32.mrb[0].mxu0
    %v2736 = vpop.f32.mrb[0].mxu0
    %2737 = vdwg.mxu0
    %2738 = vmatprep.subr.bf16.mxu0 %v2469
    %2739 = vmatpush1.bf16.msra.mxu0 %v2468
    %2740 = vmatprep.subr.bf16.mxu0 %v2473
    %2741 = vmatpush1.bf16.msra.mxu0 %v2472
    %2742 = vmatprep.subr.bf16.mxu0 %v2477
    %2743 = vmatpush1.bf16.msra.mxu0 %v2476
    %2744 = vmatprep.subr.bf16.mxu0 %v2481
    %2745 = vmatpush1.bf16.msra.mxu0 %v2480
    %2746 = vmatprep.subr.bf16.mxu0 %v2485
    %2747 = vmatpush1.bf16.msra.mxu0 %v2484
    %2748 = vmatprep.subr.bf16.mxu0 %v2489
    %2749 = vmatpush1.bf16.msra.mxu0 %v2488
    %2750 = vmatprep.subr.bf16.mxu0 %v2493
    %2751 = vmatpush1.bf16.msra.mxu0 %v2492
    %2752 = vmatprep.subr.bf16.mxu0 %v2497
    %2753 = vmatpush1.bf16.msra.mxu0 %v2496
    %2754 = vmatprep.subr.bf16.mxu0 %v2613
    %2755 = vmatpush1.bf16.msra.mxu0 %v2610
    %2756 = vmatprep.subr.bf16.mxu0 0
    %2757 = vmatpush1.bf16.msra.mxu0 0
    %2758 = vmatprep.subr.bf16.mxu0 0
    %2759 = vmatpush1.bf16.msra.mxu0 0
    %2760 = vmatprep.subr.bf16.mxu0 0
    %2761 = vmatpush1.bf16.msra.mxu0 0
    %2762 = vmatprep.subr.bf16.mxu0 0
    %2763 = vmatpush1.bf16.msra.mxu0 0
    %2764 = vmatprep.subr.bf16.mxu0 0
    %2765 = vmatpush1.bf16.msra.mxu0 0
    %2766 = vmatprep.subr.bf16.mxu0 0
    %2767 = vmatpush1.bf16.msra.mxu0 0
    %2768 = vmatprep.subr.bf16.mxu0 0
    %2769 = vmatpush1.bf16.msra.mxu0 0
    %2770 = vmatprep.mubr.bf16.mxu0 %v2600
    %2771 = vmatmul.mubr.bf16.gmra.mrb[0].mxu0 %v1986
    %v2772 = vpop.f32.mrb[0].mxu0
    %v2773 = vadd.f32 %v2732, %v2772
    %v2774 = vpop.f32.mrb[0].mxu0
    %v2775 = vadd.f32 %v2734, %v2774
    %v2776 = vpop.f32.mrb[0].mxu0
    %v2777 = vpop.f32.mrb[0].mxu0
    %2778 = vdwg.mxu0
    %v2779 = vmax.f32 %v2691, 0.0
    %v2780 = vmax.f32 %v2693, 0.0
    %v2781 = vmax.f32 %v2773, 0.0
    %v2782 = vmax.f32 %v2775, 0.0
    %v2783 = vpack.c.bf16 %v2779, %v2779
    %v2784 = vpack.c.bf16 %v2780, %v2780
    %v2785 = vpack.c.bf16 %v2781, %v2781
    %v2786 = vpack.c.bf16 %v2782, %v2782
    %v2787 = vld [vmem:[%s5] sm:$0xff]
    %v2788 = vld [vmem:[%s5 + $0x8] sm:$0xff]
    %v2789 = vld [vmem:[%s5 + $0x10] sm:$0xff]
    %v2790 = vld [vmem:[%s5 + $0x18] sm:$0xff]
    %v2791 = vld [vmem:[%s5 + $0x20] sm:$0xff]
    %v2792 = vld [vmem:[%s5 + $0x28] sm:$0xff]
    %v2793 = vld [vmem:[%s5 + $0x30] sm:$0xff]
    %v2794 = vld [vmem:[%s5 + $0x38] sm:$0xff]
    %v2795 = vld [vmem:[%s5 + $0x40] sm:$0xff]
    %v2796 = vld [vmem:[%s5 + $0x48] sm:$0xff]
    %v2797 = vld [vmem:[%s5 + $0x50] sm:$0xff]
    %v2798 = vld [vmem:[%s5 + $0x58] sm:$0xff]
    %v2799 = vld [vmem:[%s5 + $0x60] sm:$0xff]
    %v2800 = vld [vmem:[%s5 + $0x68] sm:$0xff]
    %v2801 = vld [vmem:[%s5 + $0x70] sm:$0xff]
    %v2802 = vld [vmem:[%s5 + $0x78] sm:$0xff]
    %v2803 = vld [vmem:[%s5 + $0x80] sm:$0xff]
    %v2804 = vld [vmem:[%s5 + $0x88] sm:$0xff]
    %v2805 = vld [vmem:[%s5 + $0x90] sm:$0xff]
    %v2806 = vld [vmem:[%s5 + $0x98] sm:$0xff]
    %v2807 = vld [vmem:[%s5 + $0xa0] sm:$0xff]
    %v2808 = vld [vmem:[%s5 + $0xa8] sm:$0xff]
    %v2809 = vld [vmem:[%s5 + $0xb0] sm:$0xff]
    %v2810 = vld [vmem:[%s5 + $0xb8] sm:$0xff]
    %v2811 = vld [vmem:[%s5 + $0xc0] sm:$0xff]
    %v2812 = vld [vmem:[%s5 + $0xc8] sm:$0xff]
    %v2813 = vld [vmem:[%s5 + $0xd0] sm:$0xff]
    %v2814 = vld [vmem:[%s5 + $0xd8] sm:$0xff]
    %v2815 = vld [vmem:[%s5 + $0xe0] sm:$0xff]
    %v2816 = vld [vmem:[%s5 + $0xe8] sm:$0xff]
    %v2817 = vld [vmem:[%s5 + $0xf0] sm:$0xff]
    %v2818 = vld [vmem:[%s5 + $0xf8] sm:$0xff]
    %v2819 = vld [vmem:[%s5 + $0x100] sm:$0xff]
    %v2820 = vld [vmem:[%s5 + $0x108] sm:$0xff]
    %v2821 = vld [vmem:[%s5 + $0x110] sm:$0xff]
    %v2822 = vld [vmem:[%s5 + $0x118] sm:$0xff]
    %v2823 = vld [vmem:[%s5 + $0x120] sm:$0xff]
    %v2824 = vld [vmem:[%s5 + $0x128] sm:$0xff]
    %v2825 = vld [vmem:[%s5 + $0x130] sm:$0xff]
    %v2826 = vld [vmem:[%s5 + $0x138] sm:$0xff]
    %v2827 = vld [vmem:[%s5 + $0x140] sm:$0xff]
    %v2828 = vld [vmem:[%s5 + $0x148] sm:$0xff]
    %v2829 = vld [vmem:[%s5 + $0x150] sm:$0xff]
    %v2830 = vld [vmem:[%s5 + $0x158] sm:$0xff]
    %v2831 = vld [vmem:[%s5 + $0x160] sm:$0xff]
    %v2832 = vld [vmem:[%s5 + $0x168] sm:$0xff]
    %v2833 = vld [vmem:[%s5 + $0x170] sm:$0xff]
    %v2834 = vld [vmem:[%s5 + $0x178] sm:$0xff]
    %v2835 = vld [vmem:[%s5 + $0x180] sm:$0xff]
    %v2836 = vld [vmem:[%s5 + $0x188] sm:$0xff]
    %v2837 = vld [vmem:[%s6] sm:$0x3]
    %v2839 = vlaneseq
    %v2840 = vshrl.u32 %v2839, 7
    %v2841 = vsub.s32 0, %v2840
    %v2842 = vrot.slane %v2837, %v2841
    %v2843 = vlaneseq
    %v2844 = vshrl.u32 %v2843, 7
    %v2845 = vsub.s32 1, %v2844
    %v2846 = vrot.slane %v2837, %v2845
    %v2899 = vunpack.c.l.b16 %v2787
    %v2900 = vunpack.c.h.b16 %v2787
    %v2901 = vunpack.c.l.b16 %v2788
    %v2902 = vunpack.c.h.b16 %v2788
    %v2903 = vunpack.c.l.b16 %v2789
    %v2904 = vunpack.c.h.b16 %v2789
    %v2905 = vunpack.c.l.b16 %v2790
    %v2906 = vunpack.c.h.b16 %v2790
    %v2907 = vunpack.c.l.b16 %v2791
    %v2908 = vunpack.c.h.b16 %v2791
    %v2909 = vunpack.c.l.b16 %v2792
    %v2910 = vunpack.c.h.b16 %v2792
    %v2911 = vunpack.c.l.b16 %v2793
    %v2912 = vunpack.c.h.b16 %v2793
    %v2913 = vunpack.c.l.b16 %v2794
    %v2914 = vunpack.c.h.b16 %v2794
    %v2915 = vunpack.c.l.b16 %v2795
    %v2916 = vunpack.c.h.b16 %v2795
    %v2917 = vunpack.c.l.b16 %v2796
    %v2918 = vunpack.c.h.b16 %v2796
    %v2919 = vunpack.c.l.b16 %v2797
    %v2920 = vunpack.c.h.b16 %v2797
    %v2921 = vunpack.c.l.b16 %v2798
    %v2922 = vunpack.c.h.b16 %v2798
    %v2923 = vunpack.c.l.b16 %v2799
    %v2924 = vunpack.c.h.b16 %v2799
    %v2925 = vunpack.c.l.b16 %v2800
    %v2926 = vunpack.c.h.b16 %v2800
    %v2927 = vunpack.c.l.b16 %v2801
    %v2928 = vunpack.c.h.b16 %v2801
    %v2929 = vunpack.c.l.b16 %v2802
    %v2930 = vunpack.c.h.b16 %v2802
    %v2931 = vunpack.c.l.b16 %v2803
    %v2932 = vunpack.c.h.b16 %v2803
    %v2933 = vunpack.c.l.b16 %v2804
    %v2934 = vunpack.c.h.b16 %v2804
    %v2935 = vunpack.c.l.b16 %v2805
    %v2936 = vunpack.c.h.b16 %v2805
    %v2937 = vunpack.c.l.b16 %v2806
    %v2938 = vunpack.c.h.b16 %v2806
    %v2939 = vunpack.c.l.b16 %v2807
    %v2940 = vunpack.c.h.b16 %v2807
    %v2941 = vunpack.c.l.b16 %v2808
    %v2942 = vunpack.c.h.b16 %v2808
    %v2943 = vunpack.c.l.b16 %v2809
    %v2944 = vunpack.c.h.b16 %v2809
    %v2945 = vunpack.c.l.b16 %v2810
    %v2946 = vunpack.c.h.b16 %v2810
    %v2947 = vunpack.c.l.b16 %v2811
    %v2948 = vunpack.c.h.b16 %v2811
    %v2949 = vunpack.c.l.b16 %v2812
    %v2950 = vunpack.c.h.b16 %v2812
    %v2951 = vunpack.c.l.b16 %v2813
    %v2952 = vunpack.c.h.b16 %v2813
    %v2953 = vunpack.c.l.b16 %v2814
    %v2954 = vunpack.c.h.b16 %v2814
    %v2955 = vunpack.c.l.b16 %v2815
    %v2956 = vunpack.c.h.b16 %v2815
    %v2957 = vunpack.c.l.b16 %v2816
    %v2958 = vunpack.c.h.b16 %v2816
    %v2959 = vunpack.c.l.b16 %v2817
    %v2960 = vunpack.c.h.b16 %v2817
    %v2961 = vunpack.c.l.b16 %v2818
    %v2962 = vunpack.c.h.b16 %v2818
    %v2963 = vunpack.c.l.b16 %v2819
    %v2964 = vunpack.c.h.b16 %v2819
    %v2965 = vunpack.c.l.b16 %v2820
    %v2966 = vunpack.c.h.b16 %v2820
    %v2967 = vunpack.c.l.b16 %v2821
    %v2968 = vunpack.c.h.b16 %v2821
    %v2969 = vunpack.c.l.b16 %v2822
    %v2970 = vunpack.c.h.b16 %v2822
    %v2971 = vunpack.c.l.b16 %v2823
    %v2972 = vunpack.c.h.b16 %v2823
    %v2973 = vunpack.c.l.b16 %v2824
    %v2974 = vunpack.c.h.b16 %v2824
    %v2975 = vunpack.c.l.b16 %v2825
    %v2976 = vunpack.c.h.b16 %v2825
    %v2977 = vunpack.c.l.b16 %v2826
    %v2978 = vunpack.c.h.b16 %v2826
    %v2979 = vunpack.c.l.b16 %v2827
    %v2980 = vunpack.c.h.b16 %v2827
    %v2981 = vunpack.c.l.b16 %v2828
    %v2982 = vunpack.c.h.b16 %v2828
    %v2983 = vunpack.c.l.b16 %v2829
    %v2984 = vunpack.c.h.b16 %v2829
    %v2985 = vunpack.c.l.b16 %v2830
    %v2986 = vunpack.c.h.b16 %v2830
    %v2987 = vunpack.c.l.b16 %v2831
    %v2988 = vunpack.c.h.b16 %v2831
    %v2989 = vunpack.c.l.b16 %v2832
    %v2990 = vunpack.c.h.b16 %v2832
    %v2991 = vunpack.c.l.b16 %v2833
    %v2992 = vunpack.c.h.b16 %v2833
    %v2993 = vunpack.c.l.b16 %v2834
    %v2994 = vunpack.c.h.b16 %v2834
    %v2995 = vunpack.c.l.b16 %v2835
    %v2996 = vunpack.c.h.b16 %v2835
    %v2997 = vunpack.c.l.b16 %v2836
    %v2998 = vunpack.c.h.b16 %v2836
    %v2999 = vpack.c.b16 %v2901, %v2899
    %v3000 = vpack.c.b16 %v2902, %v2900
    %v3001 = vpack.c.b16 %v2905, %v2903
    %v3002 = vpack.c.b16 %v2906, %v2904
    %v3003 = vpack.c.b16 %v2909, %v2907
    %v3004 = vpack.c.b16 %v2910, %v2908
    %v3005 = vpack.c.b16 %v2913, %v2911
    %v3006 = vpack.c.b16 %v2914, %v2912
    %v3007 = vpack.c.b16 %v2917, %v2915
    %v3008 = vpack.c.b16 %v2918, %v2916
    %v3009 = vpack.c.b16 %v2921, %v2919
    %v3010 = vpack.c.b16 %v2922, %v2920
    %v3011 = vpack.c.b16 %v2925, %v2923
    %v3012 = vpack.c.b16 %v2926, %v2924
    %v3013 = vpack.c.b16 %v2929, %v2927
    %v3014 = vpack.c.b16 %v2930, %v2928
    %v3015 = vpack.c.b16 %v2933, %v2931
    %v3016 = vpack.c.b16 %v2934, %v2932
    %v3017 = vpack.c.b16 %v2937, %v2935
    %v3018 = vpack.c.b16 %v2938, %v2936
    %v3019 = vpack.c.b16 %v2941, %v2939
    %v3020 = vpack.c.b16 %v2942, %v2940
    %v3021 = vpack.c.b16 %v2945, %v2943
    %v3022 = vpack.c.b16 %v2946, %v2944
    %v3023 = vpack.c.b16 %v2949, %v2947
    %v3024 = vpack.c.b16 %v2950, %v2948
    %v3025 = vpack.c.b16 %v2953, %v2951
    %v3026 = vpack.c.b16 %v2954, %v2952
    %v3027 = vpack.c.b16 %v2957, %v2955
    %v3028 = vpack.c.b16 %v2958, %v2956
    %v3029 = vpack.c.b16 %v2961, %v2959
    %v3030 = vpack.c.b16 %v2962, %v2960
    %v3031 = vpack.c.b16 %v2965, %v2963
    %v3032 = vpack.c.b16 %v2966, %v2964
    %v3033 = vpack.c.b16 %v2969, %v2967
    %v3034 = vpack.c.b16 %v2970, %v2968
    %v3035 = vpack.c.b16 %v2973, %v2971
    %v3036 = vpack.c.b16 %v2974, %v2972
    %v3037 = vpack.c.b16 %v2977, %v2975
    %v3038 = vpack.c.b16 %v2978, %v2976
    %v3039 = vpack.c.b16 %v2981, %v2979
    %v3040 = vpack.c.b16 %v2982, %v2980
    %v3041 = vpack.c.b16 %v2985, %v2983
    %v3042 = vpack.c.b16 %v2986, %v2984
    %v3043 = vpack.c.b16 %v2989, %v2987
    %v3044 = vpack.c.b16 %v2990, %v2988
    %v3045 = vpack.c.b16 %v2993, %v2991
    %v3046 = vpack.c.b16 %v2994, %v2992
    %v3047 = vpack.c.b16 %v2997, %v2995
    %v3048 = vpack.c.b16 %v2998, %v2996
    %vm3099 = vcmask 130048
    %v3101 = vsel %vm3099, %v2786, 0
    %3103 = vmatprep.subr.bf16.mxu0 %v3000
    %3104 = vmatpush1.bf16.msra.mxu0 %v2999
    %3105 = vmatprep.subr.bf16.mxu0 %v3002
    %3106 = vmatpush1.bf16.msra.mxu0 %v3001
    %3107 = vmatprep.subr.bf16.mxu0 %v3004
    %3108 = vmatpush1.bf16.msra.mxu0 %v3003
    %3109 = vmatprep.subr.bf16.mxu0 %v3006
    %3110 = vmatpush1.bf16.msra.mxu0 %v3005
    %3111 = vmatprep.subr.bf16.mxu0 %v3008
    %3112 = vmatpush1.bf16.msra.mxu0 %v3007
    %3113 = vmatprep.subr.bf16.mxu0 %v3010
    %3114 = vmatpush1.bf16.msra.mxu0 %v3009
    %3115 = vmatprep.subr.bf16.mxu0 %v3012
    %3116 = vmatpush1.bf16.msra.mxu0 %v3011
    %3117 = vmatprep.subr.bf16.mxu0 %v3014
    %3118 = vmatpush1.bf16.msra.mxu0 %v3013
    %3119 = vmatprep.subr.bf16.mxu0 %v3016
    %3120 = vmatpush1.bf16.msra.mxu0 %v3015
    %3121 = vmatprep.subr.bf16.mxu0 %v3018
    %3122 = vmatpush1.bf16.msra.mxu0 %v3017
    %3123 = vmatprep.subr.bf16.mxu0 %v3020
    %3124 = vmatpush1.bf16.msra.mxu0 %v3019
    %3125 = vmatprep.subr.bf16.mxu0 %v3022
    %3126 = vmatpush1.bf16.msra.mxu0 %v3021
    %3127 = vmatprep.subr.bf16.mxu0 %v3024
    %3128 = vmatpush1.bf16.msra.mxu0 %v3023
    %3129 = vmatprep.subr.bf16.mxu0 %v3026
    %3130 = vmatpush1.bf16.msra.mxu0 %v3025
    %3131 = vmatprep.subr.bf16.mxu0 %v3028
    %3132 = vmatpush1.bf16.msra.mxu0 %v3027
    %3133 = vmatprep.subr.bf16.mxu0 %v3030
    %3134 = vmatpush1.bf16.msra.mxu0 %v3029
    %3135 = vmatprep.mubr.bf16.mxu0 %v2784
    %3136 = vmatmul.mubr.bf16.gmra.mrb[0].mxu0 %v2783
    %v3137 = vpop.f32.mrb[0].mxu0
    %v3138 = vadd.f32 %v2842, %v3137
    %v3139 = vpop.f32.mrb[0].mxu0
    %v3140 = vadd.f32 %v2846, %v3139
    %v3141 = vpop.f32.mrb[0].mxu0
    %v3142 = vpop.f32.mrb[0].mxu0
    %3143 = vdwg.mxu0
    %3144 = vmatprep.subr.bf16.mxu0 %v3032
    %3145 = vmatpush1.bf16.msra.mxu0 %v3031
    %3146 = vmatprep.subr.bf16.mxu0 %v3034
    %3147 = vmatpush1.bf16.msra.mxu0 %v3033
    %3148 = vmatprep.subr.bf16.mxu0 %v3036
    %3149 = vmatpush1.bf16.msra.mxu0 %v3035
    %3150 = vmatprep.subr.bf16.mxu0 %v3038
    %3151 = vmatpush1.bf16.msra.mxu0 %v3037
    %3152 = vmatprep.subr.bf16.mxu0 %v3040
    %3153 = vmatpush1.bf16.msra.mxu0 %v3039
    %3154 = vmatprep.subr.bf16.mxu0 %v3042
    %3155 = vmatpush1.bf16.msra.mxu0 %v3041
    %3156 = vmatprep.subr.bf16.mxu0 %v3044
    %3157 = vmatpush1.bf16.msra.mxu0 %v3043
    %3158 = vmatprep.subr.bf16.mxu0 %v3046
    %3159 = vmatpush1.bf16.msra.mxu0 %v3045
    %3160 = vmatprep.subr.bf16.mxu0 %v3048
    %3161 = vmatpush1.bf16.msra.mxu0 %v3047
    %3162 = vmatprep.subr.bf16.mxu0 0
    %3163 = vmatpush1.bf16.msra.mxu0 0
    %3164 = vmatprep.subr.bf16.mxu0 0
    %3165 = vmatpush1.bf16.msra.mxu0 0
    %3166 = vmatprep.subr.bf16.mxu0 0
    %3167 = vmatpush1.bf16.msra.mxu0 0
    %3168 = vmatprep.subr.bf16.mxu0 0
    %3169 = vmatpush1.bf16.msra.mxu0 0
    %3170 = vmatprep.subr.bf16.mxu0 0
    %3171 = vmatpush1.bf16.msra.mxu0 0
    %3172 = vmatprep.subr.bf16.mxu0 0
    %3173 = vmatpush1.bf16.msra.mxu0 0
    %3174 = vmatprep.subr.bf16.mxu0 0
    %3175 = vmatpush1.bf16.msra.mxu0 0
    %3176 = vmatprep.mubr.bf16.mxu0 %v3101
    %3177 = vmatmul.mubr.bf16.gmra.mrb[0].mxu0 %v2785
    %v3178 = vpop.f32.mrb[0].mxu0
    %v3179 = vadd.f32 %v3138, %v3178
    %v3180 = vpop.f32.mrb[0].mxu0
    %v3181 = vadd.f32 %v3140, %v3180
    %v3182 = vpop.f32.mrb[0].mxu0
    %v3183 = vpop.f32.mrb[0].mxu0
    %3184 = vdwg.mxu0
    %v3185 = vmax.f32 %v3179, 0.0
    %v3186 = vmax.f32 %v3181, 0.0
    %v3187 = vpack.c.bf16 %v3185, %v3185
    %v3188 = vpack.c.bf16 %v3186, %v3186
    %v3189 = vld [vmem:[%s7] sm:$0xff]
    %v3190 = vld [vmem:[%s7 + $0x8] sm:$0xff]
    %v3191 = vld [vmem:[%s7 + $0x10] sm:$0xff]
    %v3192 = vld [vmem:[%s7 + $0x18] sm:$0xff]
    %v3193 = vld [vmem:[%s7 + $0x20] sm:$0xff]
    %v3194 = vld [vmem:[%s7 + $0x28] sm:$0xff]
    %v3195 = vld [vmem:[%s7 + $0x30] sm:$0xff]
    %v3196 = vld [vmem:[%s7 + $0x38] sm:$0xff]
    %v3197 = vld [vmem:[%s7 + $0x40] sm:$0xff]
    %v3198 = vld [vmem:[%s7 + $0x48] sm:$0xff]
    %v3199 = vld [vmem:[%s7 + $0x50] sm:$0xff]
    %v3200 = vld [vmem:[%s7 + $0x58] sm:$0xff]
    %v3201 = vld [vmem:[%s7 + $0x60] sm:$0xff]
    %v3202 = vld [vmem:[%s7 + $0x68] sm:$0xff]
    %v3203 = vld [vmem:[%s7 + $0x70] sm:$0xff]
    %v3204 = vld [vmem:[%s7 + $0x78] sm:$0xff]
    %v3205 = vld [vmem:[%s7 + $0x80] sm:$0xff]
    %v3206 = vld [vmem:[%s7 + $0x88] sm:$0xff]
    %v3207 = vld [vmem:[%s8] sm:$0x3]
    %v3209 = vlaneseq
    %v3210 = vshrl.u32 %v3209, 7
    %v3211 = vsub.s32 0, %v3210
    %v3212 = vrot.slane %v3207, %v3211
    %v3213 = vlaneseq
    %v3214 = vshrl.u32 %v3213, 7
    %v3215 = vsub.s32 1, %v3214
    %v3216 = vrot.slane %v3207, %v3215
    %v3237 = vunpack.c.l.b16 %v3189
    %v3238 = vunpack.c.h.b16 %v3189
    %v3239 = vunpack.c.l.b16 %v3190
    %v3240 = vunpack.c.h.b16 %v3190
    %v3241 = vunpack.c.l.b16 %v3191
    %v3242 = vunpack.c.h.b16 %v3191
    %v3243 = vunpack.c.l.b16 %v3192
    %v3244 = vunpack.c.h.b16 %v3192
    %v3245 = vunpack.c.l.b16 %v3193
    %v3246 = vunpack.c.h.b16 %v3193
    %v3247 = vunpack.c.l.b16 %v3194
    %v3248 = vunpack.c.h.b16 %v3194
    %v3249 = vunpack.c.l.b16 %v3195
    %v3250 = vunpack.c.h.b16 %v3195
    %v3251 = vunpack.c.l.b16 %v3196
    %v3252 = vunpack.c.h.b16 %v3196
    %v3253 = vunpack.c.l.b16 %v3197
    %v3254 = vunpack.c.h.b16 %v3197
    %v3255 = vunpack.c.l.b16 %v3198
    %v3256 = vunpack.c.h.b16 %v3198
    %v3257 = vunpack.c.l.b16 %v3199
    %v3258 = vunpack.c.h.b16 %v3199
    %v3259 = vunpack.c.l.b16 %v3200
    %v3260 = vunpack.c.h.b16 %v3200
    %v3261 = vunpack.c.l.b16 %v3201
    %v3262 = vunpack.c.h.b16 %v3201
    %v3263 = vunpack.c.l.b16 %v3202
    %v3264 = vunpack.c.h.b16 %v3202
    %v3265 = vunpack.c.l.b16 %v3203
    %v3266 = vunpack.c.h.b16 %v3203
    %v3267 = vunpack.c.l.b16 %v3204
    %v3268 = vunpack.c.h.b16 %v3204
    %v3269 = vunpack.c.l.b16 %v3205
    %v3270 = vunpack.c.h.b16 %v3205
    %v3271 = vunpack.c.l.b16 %v3206
    %v3272 = vunpack.c.h.b16 %v3206
    %v3273 = vpack.c.b16 %v3239, %v3237
    %v3274 = vpack.c.b16 %v3240, %v3238
    %v3275 = vpack.c.b16 %v3243, %v3241
    %v3276 = vpack.c.b16 %v3244, %v3242
    %v3277 = vpack.c.b16 %v3247, %v3245
    %v3278 = vpack.c.b16 %v3248, %v3246
    %v3279 = vpack.c.b16 %v3251, %v3249
    %v3280 = vpack.c.b16 %v3252, %v3250
    %v3281 = vpack.c.b16 %v3255, %v3253
    %v3282 = vpack.c.b16 %v3256, %v3254
    %v3283 = vpack.c.b16 %v3259, %v3257
    %v3284 = vpack.c.b16 %v3260, %v3258
    %v3285 = vpack.c.b16 %v3263, %v3261
    %v3286 = vpack.c.b16 %v3264, %v3262
    %v3287 = vpack.c.b16 %v3267, %v3265
    %v3288 = vpack.c.b16 %v3268, %v3266
    %v3289 = vpack.c.b16 %v3271, %v3269
    %v3290 = vpack.c.b16 %v3272, %v3270
    %v3310 = vsel %vm3099, %v3188, 0
    %3312 = vmatprep.subr.bf16.mxu0 %v3274
    %3313 = vmatpush1.bf16.msra.mxu0 %v3273
    %3314 = vmatprep.subr.bf16.mxu0 %v3276
    %3315 = vmatpush1.bf16.msra.mxu0 %v3275
    %3316 = vmatprep.subr.bf16.mxu0 %v3278
    %3317 = vmatpush1.bf16.msra.mxu0 %v3277
    %3318 = vmatprep.subr.bf16.mxu0 %v3280
    %3319 = vmatpush1.bf16.msra.mxu0 %v3279
    %3320 = vmatprep.subr.bf16.mxu0 %v3282
    %3321 = vmatpush1.bf16.msra.mxu0 %v3281
    %3322 = vmatprep.subr.bf16.mxu0 %v3284
    %3323 = vmatpush1.bf16.msra.mxu0 %v3283
    %3324 = vmatprep.subr.bf16.mxu0 %v3286
    %3325 = vmatpush1.bf16.msra.mxu0 %v3285
    %3326 = vmatprep.subr.bf16.mxu0 %v3288
    %3327 = vmatpush1.bf16.msra.mxu0 %v3287
    %3328 = vmatprep.subr.bf16.mxu0 %v3290
    %3329 = vmatpush1.bf16.msra.mxu0 %v3289
    %3330 = vmatprep.subr.bf16.mxu0 0
    %3331 = vmatpush1.bf16.msra.mxu0 0
    %3332 = vmatprep.subr.bf16.mxu0 0
    %3333 = vmatpush1.bf16.msra.mxu0 0
    %3334 = vmatprep.subr.bf16.mxu0 0
    %3335 = vmatpush1.bf16.msra.mxu0 0
    %3336 = vmatprep.subr.bf16.mxu0 0
    %3337 = vmatpush1.bf16.msra.mxu0 0
    %3338 = vmatprep.subr.bf16.mxu0 0
    %3339 = vmatpush1.bf16.msra.mxu0 0
    %3340 = vmatprep.subr.bf16.mxu0 0
    %3341 = vmatpush1.bf16.msra.mxu0 0
    %3342 = vmatprep.subr.bf16.mxu0 0
    %3343 = vmatpush1.bf16.msra.mxu0 0
    %3344 = vmatprep.mubr.bf16.mxu0 %v3310
    %3345 = vmatmul.mubr.bf16.gmra.mrb[0].mxu0 %v3187
    %v3346 = vpop.f32.mrb[0].mxu0
    %v3347 = vadd.f32 %v3212, %v3346
    %v3348 = vpop.f32.mrb[0].mxu0
    %v3349 = vadd.f32 %v3216, %v3348
    %v3350 = vpop.f32.mrb[0].mxu0
    %v3351 = vpop.f32.mrb[0].mxu0
    %3352 = vdwg.mxu0
    %v3353 = vmax.f32 %v3347, 0.0
    %v3354 = vmax.f32 %v3349, 0.0
    %v3355 = vpack.c.bf16 %v3353, %v3353
    %v3356 = vpack.c.bf16 %v3354, %v3354
    %v3357 = vld [vmem:[%s9] sm:$0xf]
    %v3358 = vld [vmem:[%s9 + $0x4] sm:$0xf]
    %v3359 = vld [vmem:[%s9 + $0x8] sm:$0xf]
    %v3360 = vld [vmem:[%s9 + $0xc] sm:$0xf]
    %v3361 = vld [vmem:[%s9 + $0x10] sm:$0xf]
    %v3362 = vld [vmem:[%s9 + $0x14] sm:$0xf]
    %v3363 = vld [vmem:[%s9 + $0x18] sm:$0xf]
    %v3364 = vld [vmem:[%s9 + $0x1c] sm:$0xf]
    %v3365 = vld [vmem:[%s9 + $0x20] sm:$0xf]
    %v3366 = vld [vmem:[%s9 + $0x24] sm:$0xf]
    %v3367 = vld [vmem:[%s9 + $0x28] sm:$0xf]
    %v3368 = vld [vmem:[%s9 + $0x2c] sm:$0xf]
    %v3369 = vld [vmem:[%s9 + $0x30] sm:$0xf]
    %v3370 = vld [vmem:[%s9 + $0x34] sm:$0xf]
    %v3371 = vld [vmem:[%s9 + $0x38] sm:$0xf]
    %v3372 = vld [vmem:[%s9 + $0x3c] sm:$0xf]
    %v3373 = vld [vmem:[%s9 + $0x40] sm:$0xf]
    %v3374 = vld [vmem:[%s9 + $0x44] sm:$0xf]
    %v3375 = vld [vmem:[%s10] sm:$0x1]
    %v3377 = vlaneseq
    %v3378 = vshrl.u32 %v3377, 7
    %v3379 = vsub.s32 0, %v3378
    %v3380 = vrot.slane %v3375, %v3379
    %v3400 = vunpack.c.l.b16 %v3357
    %v3401 = vunpack.c.l.b16 %v3358
    %v3402 = vunpack.c.l.b16 %v3359
    %v3403 = vunpack.c.l.b16 %v3360
    %v3404 = vunpack.c.l.b16 %v3361
    %v3405 = vunpack.c.l.b16 %v3362
    %v3406 = vunpack.c.l.b16 %v3363
    %v3407 = vunpack.c.l.b16 %v3364
    %v3408 = vunpack.c.l.b16 %v3365
    %v3409 = vunpack.c.l.b16 %v3366
    %v3410 = vunpack.c.l.b16 %v3367
    %v3411 = vunpack.c.l.b16 %v3368
    %v3412 = vunpack.c.l.b16 %v3369
    %v3413 = vunpack.c.l.b16 %v3370
    %v3414 = vunpack.c.l.b16 %v3371
    %v3415 = vunpack.c.l.b16 %v3372
    %v3416 = vunpack.c.l.b16 %v3373
    %v3417 = vunpack.c.l.b16 %v3374
    %v3418 = vpack.c.b16 %v3401, %v3400
    %v3419 = vpack.c.b16 %v3403, %v3402
    %v3420 = vpack.c.b16 %v3405, %v3404
    %v3421 = vpack.c.b16 %v3407, %v3406
    %v3422 = vpack.c.b16 %v3409, %v3408
    %v3423 = vpack.c.b16 %v3411, %v3410
    %v3424 = vpack.c.b16 %v3413, %v3412
    %v3425 = vpack.c.b16 %v3415, %v3414
    %v3426 = vpack.c.b16 %v3417, %v3416
    %v3437 = vsel %vm3099, %v3356, 0
    %3439 = vmatprep.subr.bf16.mxu0 0
    %3440 = vmatpush1.bf16.msra.mxu0 %v3418
    %3441 = vmatprep.subr.bf16.mxu0 0
    %3442 = vmatpush1.bf16.msra.mxu0 %v3419
    %3443 = vmatprep.subr.bf16.mxu0 0
    %3444 = vmatpush1.bf16.msra.mxu0 %v3420
    %3445 = vmatprep.subr.bf16.mxu0 0
    %3446 = vmatpush1.bf16.msra.mxu0 %v3421
    %3447 = vmatprep.subr.bf16.mxu0 0
    %3448 = vmatpush1.bf16.msra.mxu0 %v3422
    %3449 = vmatprep.subr.bf16.mxu0 0
    %3450 = vmatpush1.bf16.msra.mxu0 %v3423
    %3451 = vmatprep.subr.bf16.mxu0 0
    %3452 = vmatpush1.bf16.msra.mxu0 %v3424
    %3453 = vmatprep.subr.bf16.mxu0 0
    %3454 = vmatpush1.bf16.msra.mxu0 %v3425
    %3455 = vmatprep.subr.bf16.mxu0 0
    %3456 = vmatpush1.bf16.msra.mxu0 %v3426
    %3457 = vmatprep.subr.bf16.mxu0 0
    %3458 = vmatpush1.bf16.msra.mxu0 0
    %3459 = vmatprep.subr.bf16.mxu0 0
    %3460 = vmatpush1.bf16.msra.mxu0 0
    %3461 = vmatprep.subr.bf16.mxu0 0
    %3462 = vmatpush1.bf16.msra.mxu0 0
    %3463 = vmatprep.subr.bf16.mxu0 0
    %3464 = vmatpush1.bf16.msra.mxu0 0
    %3465 = vmatprep.subr.bf16.mxu0 0
    %3466 = vmatpush1.bf16.msra.mxu0 0
    %3467 = vmatprep.subr.bf16.mxu0 0
    %3468 = vmatpush1.bf16.msra.mxu0 0
    %3469 = vmatprep.subr.bf16.mxu0 0
    %3470 = vmatpush1.bf16.msra.mxu0 0
    %3471 = vmatprep.mubr.bf16.mxu0 %v3437
    %3472 = vmatmul.mubr.bf16.gmra.mrb[0].mxu0 %v3355
    %v3473 = vpop.f32.mrb[0].mxu0
    %v3474 = vadd.f32 %v3380, %v3473
    %v3475 = vpop.f32.mrb[0].mxu0
    %v3476 = vpop.f32.mrb[0].mxu0
    %v3477 = vpop.f32.mrb[0].mxu0
    %3478 = vdwg.mxu0
    %3479 = vst [vmem:[#allocation2] sm:$0x3] %v3474
    // Predicated region
    $region46: #{cnn_forward.1} parent=1 // pred_check
      _
    $region47: #{cnn_forward.1} parent=1 // pred_check_branch
      %3481 = sbr.rel (0) target = $region49
    $region48: #{cnn_forward.1} parent=1 // pred_region
      %s3483 = ssub.s32 32, 32
      %3484 = vsyncadd [#allocation3], %s3483
      %s3486 = sshll.u32 [#allocation2], 4
      %s3487 = int_to_ptr.vmem [resolvable:$true] %s3486
      %3489 = dma.vmem_to_hbm [thread:$0]  %s3487, 32, %s11, [#allocation3]
    $region49: #{cnn_forward.1} parent=1 // pred_fallthru
      _
    // Predicated region
    $region50: #{cnn_forward.1} parent=1 // pred_check
      _
    $region51: #{cnn_forward.1} parent=1 // pred_check_branch
      %3491 = sbr.rel (0) target = $region53
    $region52: #{cnn_forward.1} parent=1 // pred_region
      %3492 = dma.done [#allocation3], 32
    $region53: #{cnn_forward.1} parent=1 // pred_fallthru
      _
    %3493 = vsyncpa [#allocation3], 1

</llo_original>
